<compile_context>
chip_gen: v6e
topology: v6e:2x2x1
jax: 0.10.0
libtpu: 0.0.40
codegen_flags: <defaults>
</compile_context>

<pallas_src>
import functools

import jax
import jax.numpy as jnp
import numpy as np
from jax.experimental import pallas as pl
from jax.experimental.pallas import tpu as pltpu


# ----------------------------------------------------------------------------
# Fused Bottleneck kernel
# ----------------------------------------------------------------------------
def _bottleneck_kernel(x_ref, w1_ref, b1_ref, w2_ref, b2_ref, o_ref, hpad_ref,
                       *, H, W, PAD, add, use_mxu):
    """Fused: cv1(1x1)+BN+SiLU -> cv2(3x3, pad=1)+BN+SiLU -> (+x if add).

    x_ref   : (TB, c1, H*W)   batch tile, channels-major, spatial flattened
    MXU path (VMEM):
      w1_ref: (ch, c1)   b1_ref: (ch, 1)   w2_ref: (c2, 9*ch)   b2_ref: (c2, 1)
    VPU path (SMEM, flat):
      w1_ref: (ch*c1,)   b1_ref: (ch,)     w2_ref: (9*c2*ch,)   b2_ref: (c2,)
    o_ref   : (TB, c2, H*W)
    hpad_ref: (ch, H*W + 2*PAD) VMEM scratch; PAD-wide zero halos handle the
              dy out-of-bounds taps of the 3x3 conv.
    """
    HW = H * W
    TB, c1 = x_ref.shape[0], x_ref.shape[1]
    c2 = o_ref.shape[1]
    ch = hpad_ref.shape[0]

    # Zero only the two halo slices (cheap vs. the full scratch); interior is
    # fully overwritten every batch element.  Done unconditionally so it stays
    # correct when the "parallel" batch axis is sharded across TensorCores.
    hpad_ref[:, :PAD] = jnp.zeros((ch, PAD), jnp.float32)
    hpad_ref[:, PAD + HW:PAD + HW + PAD] = jnp.zeros((ch, PAD), jnp.float32)

    # Column-edge validity, generated on-chip (no HBM mask tensor).  Row (dy)
    # overflow lands in the zero halo since PAD >= W + 1, so dx==1 taps need
    # no mask and dx==0 / dx==2 share one mask each across all dy.
    col = jax.lax.broadcasted_iota(jnp.int32, (1, HW), 1) % W
    not_left = (col != 0).astype(jnp.float32)         # valid for dx == 0 taps
    not_right = (col != W - 1).astype(jnp.float32)    # valid for dx == 2 taps
    if use_mxu:
        # hoisted sublane broadcasts (JAX does not CSE broadcast_in_dim)
        mask_l = jnp.broadcast_to(not_left, (ch, HW))
        mask_r = jnp.broadcast_to(not_right, (ch, HW))

    for b in range(TB):                                # static, small TB
        x = x_ref[b].astype(jnp.float32)               # (c1, HW), lane-dense

        if use_mxu:
            # ---- cv1: 1x1 conv + folded BN + SiLU (one MXU matmul) ---------
            h = jnp.dot(w1_ref[...], x, preferred_element_type=jnp.float32)
            h = h + b1_ref[...]
            h = h * jax.nn.sigmoid(h)
            hpad_ref[:, PAD:PAD + HW] = h              # lane-aligned interior

            # ---- cv2: stack the 9 shifted taps -> ONE K=9*ch matmul --------
            taps = []
            for dy in range(3):
                for dx in range(3):
                    d = (dy - 1) * W + (dx - 1)
                    tap = hpad_ref[:, PAD + d:PAD + d + HW]
                    if dx == 0:
                        tap = tap * mask_l
                    elif dx == 2:
                        tap = tap * mask_r
                    taps.append(tap)
            stacked = jnp.concatenate(taps, axis=0)    # (9*ch, HW)
            y = jnp.dot(w2_ref[...], stacked,
                        preferred_element_type=jnp.float32)
            y = y + b2_ref[...]
            y = y * jax.nn.sigmoid(y)
            if add:                                    # residual: resident x
                y = y + x
            o_ref[b] = y.astype(o_ref.dtype)
        else:
            # ---- tiny channels: SMEM scalar-broadcast MACs on the VPU ------
            # cv1: build each hidden-channel row, write straight into hpad.
            for co in range(ch):
                r = jnp.zeros((1, HW), jnp.float32)
                for ci in range(c1):
                    r = r + w1_ref[co * c1 + ci] * x[ci:ci + 1, :]
                r = r + b1_ref[co]
                r = r * jax.nn.sigmoid(r)
                hpad_ref[co:co + 1, PAD:PAD + HW] = r
            # cv2: load each (tap, ci) slice once, fan out over c2 outputs.
            accs = [jnp.zeros((1, HW), jnp.float32) for _ in range(c2)]
            for dy in range(3):
                for dx in range(3):
                    t = 3 * dy + dx
                    d = (dy - 1) * W + (dx - 1)
                    for ci in range(ch):
                        tap = hpad_ref[ci:ci + 1, PAD + d:PAD + d + HW]
                        if dx == 0:
                            tap = tap * not_left
                        elif dx == 2:
                            tap = tap * not_right
                        for co in range(c2):
                            accs[co] = accs[co] + \
                                w2_ref[(t * c2 + co) * ch + ci] * tap
            rows = []
            for co in range(c2):
                yr = accs[co] + b2_ref[co]
                yr = yr * jax.nn.sigmoid(yr)
                if add:
                    yr = yr + x[co:co + 1, :]
                rows.append(yr)
            o_ref[b] = jnp.concatenate(rows, axis=0).astype(o_ref.dtype)


def _pick_batch_tile(n, c1, c2, hw, itemsize):
    """Batch elements per grid step: big enough to amortize ~0.35us/step
    overhead, but keep >= 2 grid steps so v7x's 2 TCs both get work."""
    per_b = max((c1 + c2) * hw * itemsize, 1)
    tb = max(1, min(n, (512 * 1024) // per_b))
    if n >= 2:
        tb = max(1, min(tb, n // 2))
    while n % tb:
        tb -= 1
    return tb


def bottleneck_forward(x_nchw, w1, b1, w2, b2, ch, add, use_mxu):
    n, c1, h, w = x_nchw.shape
    c2 = b2.shape[0]
    hw = h * w

    pad = ((w + 1 + 127) // 128) * 128          # lane-aligned halo width
    assert pad % 128 == 0 and pad >= w + 1      # zero halo must cover dy taps

    tb = _pick_batch_tile(n, c1, c2, hw, x_nchw.dtype.itemsize)
    x_flat = x_nchw.reshape(n, c1, hw)          # trailing-dim collapse: free

    kernel = functools.partial(_bottleneck_kernel, H=h, W=w, PAD=pad,
                               add=add, use_mxu=use_mxu)
    if use_mxu:
        w_specs = [
            pl.BlockSpec((ch, c1), lambda i: (0, 0)),        # w1 (resident)
            pl.BlockSpec((ch, 1), lambda i: (0, 0)),         # b1
            pl.BlockSpec((c2, 9 * ch), lambda i: (0, 0)),    # w2, K = 9*ch
            pl.BlockSpec((c2, 1), lambda i: (0, 0)),         # b2
        ]
    else:
        smem = pl.BlockSpec(memory_space=pltpu.MemorySpace.SMEM)
        w_specs = [smem, smem, smem, smem]                   # scalar weights

    out = pl.pallas_call(
        kernel,
        out_shape=jax.ShapeDtypeStruct((n, c2, hw), x_nchw.dtype),
        grid=(n // tb,),
        in_specs=[pl.BlockSpec((tb, c1, hw), lambda i: (i, 0, 0))] + w_specs,
        out_specs=pl.BlockSpec((tb, c2, hw), lambda i: (i, 0, 0)),
        scratch_shapes=[pltpu.VMEM((ch, hw + 2 * pad), jnp.float32)],
        compiler_params=pltpu.CompilerParams(
            dimension_semantics=("parallel",)),
    )(x_flat, w1, b1, w2, b2)
    return out.reshape(n, c2, h, w)


# ----------------------------------------------------------------------------
# BatchNorm folding (eval mode): y = gamma*(conv(x)-mean)/sqrt(var+eps)+beta
# ----------------------------------------------------------------------------
def fold_bn(conv_w_oihw, gamma, beta, mean, var, eps=1e-5):
    scale = gamma / jnp.sqrt(var + eps)                      # (Cout,)
    w_eff = conv_w_oihw * scale[:, None, None, None]         # (Cout,Cin,kh,kw)
    b_eff = beta - mean * scale                              # (Cout,)
    return w_eff, b_eff


# ----------------------------------------------------------------------------
# Bottleneck module (parameters created deterministically in-script)
# ----------------------------------------------------------------------------
class BottleneckPallas:
    def __init__(self, c1, c2, shortcut=True, g=1, e=0.5, key=None):
        assert g == 1, "grouped conv not used in this instantiation"
        ch = int(c2 * e)
        self.c1, self.c2, self.ch = c1, c2, ch
        self.add = bool(shortcut and c1 == c2)
        # Generation-aware-ish threshold: stacked-tap MXU matmul has K = 9*ch;
        # stay on the VPU scalar-MAC path only for genuinely tiny channels.
        self.use_mxu = (9 * ch) >= 64

        k = jax.random.split(key, 10)
        # cv1: Conv2d(c1, ch, 1) weight (ch, c1, 1, 1); BN(ch)
        w1 = 0.2 * jax.random.normal(k[0], (ch, c1, 1, 1), jnp.float32)
        g1 = 1.0 + 0.1 * jax.random.normal(k[1], (ch,), jnp.float32)
        b1 = 0.1 * jax.random.normal(k[2], (ch,), jnp.float32)
        m1 = 0.1 * jax.random.normal(k[3], (ch,), jnp.float32)
        v1 = 1.0 + 0.1 * jnp.abs(jax.random.normal(k[4], (ch,), jnp.float32))
        # cv2: Conv2d(ch, c2, 3, pad=1) weight (c2, ch, 3, 3); BN(c2)
        w2 = 0.2 * jax.random.normal(k[5], (c2, ch, 3, 3), jnp.float32)
        g2 = 1.0 + 0.1 * jax.random.normal(k[6], (c2,), jnp.float32)
        b2 = 0.1 * jax.random.normal(k[7], (c2,), jnp.float32)
        m2 = 0.1 * jax.random.normal(k[8], (c2,), jnp.float32)
        v2 = 1.0 + 0.1 * jnp.abs(jax.random.normal(k[9], (c2,), jnp.float32))

        w1e, b1e = fold_bn(w1, g1, b1, m1, v1)               # (ch,c1,1,1),(ch,)
        w2e, b2e = fold_bn(w2, g2, b2, m2, v2)               # (c2,ch,3,3),(c2,)

        if self.use_mxu:
            # MXU layouts: w2 as (c2, 9*ch), K index = (3*dy+dx)*ch + ci.
            self.w1 = w1e[:, :, 0, 0]                                  # (ch,c1)
            self.b1 = b1e.reshape(ch, 1)                               # (ch,1)
            self.w2 = jnp.transpose(w2e, (0, 2, 3, 1)).reshape(c2, 9 * ch)
            self.b2 = b2e.reshape(c2, 1)                               # (c2,1)
        else:
            # SMEM scalar layouts: flat, idx = co*c1+ci / (t*c2+co)*ch+ci.
            self.w1 = w1e[:, :, 0, 0].reshape(-1)                      # (ch*c1,)
            self.b1 = b1e                                              # (ch,)
            self.w2 = jnp.transpose(w2e, (2, 3, 0, 1)).reshape(-1)     # (9*c2*ch,)
            self.b2 = b2e                                              # (c2,)

        # Keep raw params for the pure-JAX reference.
        self._raw = (w1, g1, b1, m1, v1, w2, g2, b2, m2, v2)

    def __call__(self, x_nchw):
        return bottleneck_forward(x_nchw, self.w1, self.b1, self.w2, self.b2,
                                  self.ch, self.add, self.use_mxu)

    # Pure-JAX reference (lax convs, NCHW) for validation.
    def reference(self, x_nchw):
        w1, g1, b1, m1, v1, w2, g2, b2, m2, v2 = self._raw
        eps = 1e-5

        def convbnact(x, w, gamma, beta, mean, var, pad):
            y = jax.lax.conv_general_dilated(
                x, w, window_strides=(1, 1), padding=[(pad, pad), (pad, pad)],
                dimension_numbers=("NCHW", "OIHW", "NCHW"),
                precision=jax.lax.Precision.HIGHEST)
            y = (y - mean[None, :, None, None]) / jnp.sqrt(var + eps)[None, :, None, None]
            y = y * gamma[None, :, None, None] + beta[None, :, None, None]
            return y * jax.nn.sigmoid(y)

        h = convbnact(x_nchw, w1, g1, b1, m1, v1, pad=0)
        y = convbnact(h, w2, g2, b2, m2, v2, pad=1)
        return x_nchw + y if self.add else y


if __name__ == "__main__":
    key = jax.random.PRNGKey(0)
    kx1, kp1, kx2, kp2 = jax.random.split(key, 4)

    # 1) tiny channels -> SMEM/VPU path (shortcut active since c1 == c2)
    x1 = jax.random.normal(kx1, (2, 4, 16, 16), jnp.float32)
    blk1 = BottleneckPallas(c1=4, c2=4, shortcut=True, g=1, e=0.5, key=kp1)
    out1 = jax.block_until_ready(blk1(x1))
    ref1 = jax.block_until_ready(blk1.reference(x1))
    assert out1.shape == ref1.shape == (2, 4, 16, 16)
    np.testing.assert_allclose(np.asarray(out1), np.asarray(ref1),
                               rtol=1e-3, atol=1e-3)

    # 2) larger channels -> stacked-tap MXU path (K = 9*ch = 288)
    x2 = jax.random.normal(kx2, (2, 64, 16, 16), jnp.float32)
    blk2 = BottleneckPallas(c1=64, c2=64, shortcut=True, g=1, e=0.5, key=kp2)
    out2 = jax.block_until_ready(blk2(x2))
    ref2 = jax.block_until_ready(blk2.reference(x2))
    assert out2.shape == ref2.shape == (2, 64, 16, 16)
    np.testing.assert_allclose(np.asarray(out2), np.asarray(ref2),
                               rtol=1e-3, atol=1e-3)

    print("KERNEL_OK")
</pallas_src>

<mosaic_0001>
module attributes {stable_mosaic.version = 11 : i64} {
  func.func @_bottleneck_kernel(%arg0: i32, %arg1: memref<1x4x256xf32, #tpu.memory_space<vmem>>, %arg2: memref<8xf32, #tpu.memory_space<smem>>, %arg3: memref<2xf32, #tpu.memory_space<smem>>, %arg4: memref<72xf32, #tpu.memory_space<smem>>, %arg5: memref<4xf32, #tpu.memory_space<smem>>, %arg6: memref<1x4x256xf32, #tpu.memory_space<vmem>>, %arg7: memref<2x512xf32, #tpu.memory_space<vmem>>) attributes {dimension_semantics = [#tpu.dimension_semantics<parallel>], iteration_bounds = array<i64: 2>, scalar_prefetch = 0 : i64, scratch_operands = 1 : i64, tpu.core_type = #tpu.core_type<tc>, window_params = [{transform_indices = @transform_0, window_bounds = array<i64: 1, 4, 256>}, {transform_indices = @transform_1, window_bounds = array<i64: 8>}, {transform_indices = @transform_2, window_bounds = array<i64: 2>}, {transform_indices = @transform_3, window_bounds = array<i64: 72>}, {transform_indices = @transform_4, window_bounds = array<i64: 4>}, {transform_indices = @transform_5, window_bounds = array<i64: 1, 4, 256>}]} {
    %cst = arith.constant 0.000000e+00 : f32
    %0 = vector.broadcast %cst : f32 to vector<2x128xf32>
    %c0 = arith.constant 0 : index
    %c0_0 = arith.constant 0 : index
    %1 = vector.load %arg7[%c0, %c0_0] : memref<2x512xf32, #tpu.memory_space<vmem>>, vector<2x128xf32>
    tpu.vector_store %arg7[%c0, %c0_0], %0 {strides = array<i32>} : memref<2x512xf32, #tpu.memory_space<vmem>>, vector<2x128xf32>,
    %cst_1 = arith.constant 0.000000e+00 : f32
    %2 = vector.broadcast %cst_1 : f32 to vector<2x128xf32>
    %c0_2 = arith.constant 0 : index
    %c384 = arith.constant 384 : index
    %3 = vector.load %arg7[%c0_2, %c384] : memref<2x512xf32, #tpu.memory_space<vmem>>, vector<2x128xf32>
    tpu.vector_store %arg7[%c0_2, %c384], %2 {strides = array<i32>} : memref<2x512xf32, #tpu.memory_space<vmem>>, vector<2x128xf32>,
    %4 = tpu.iota {dimensions = array<i32: 1>} : vector<1x256xi32>
    %c16_i32 = arith.constant 16 : i32
    %c0_i32 = arith.constant 0 : i32
    %5 = arith.cmpi eq, %c16_i32, %c0_i32 : i32
    %c1_i32 = arith.constant 1 : i32
    %6 = arith.select %5, %c1_i32, %c16_i32 : i32
    %7 = vector.broadcast %6 : i32 to vector<1x256xi32>
    %8 = arith.remsi %4, %7 : vector<1x256xi32>
    %c0_i32_3 = arith.constant 0 : i32
    %9 = vector.broadcast %c0_i32_3 : i32 to vector<1x256xi32>
    %10 = arith.cmpi ne, %8, %9 : vector<1x256xi32>
    %c0_i32_4 = arith.constant 0 : i32
    %11 = vector.broadcast %c0_i32_4 : i32 to vector<1x256xi32>
    %12 = arith.cmpi slt, %8, %11 : vector<1x256xi32>
    %c0_i32_5 = arith.constant 0 : i32
    %13 = arith.cmpi slt, %6, %c0_i32_5 : i32
    %14 = vector.broadcast %13 : i1 to vector<1x256xi1>
    %15 = vector.broadcast %14 : vector<1x256xi1> to vector<1x256xi1>
    %16 = arith.xori %12, %15 : vector<1x256xi1>
    %17 = arith.andi %16, %10 : vector<1x256xi1>
    %18 = vector.broadcast %6 : i32 to vector<1x256xi32>
    %19 = arith.addi %8, %18 : vector<1x256xi32>
    %20 = arith.select %17, %19, %8 : vector<1x256xi1>, vector<1x256xi32>
    %c0_i32_6 = arith.constant 0 : i32
    %21 = vector.broadcast %c0_i32_6 : i32 to vector<1x256xi32>
    %22 = arith.cmpi ne, %20, %21 : vector<1x256xi32>
    %23 = arith.extui %22 : vector<1x256xi1> to vector<1x256xi32>
    %24 = arith.sitofp %23 : vector<1x256xi32> to vector<1x256xf32>
    %c15_i32 = arith.constant 15 : i32
    %25 = vector.broadcast %c15_i32 : i32 to vector<1x256xi32>
    %26 = arith.cmpi ne, %20, %25 : vector<1x256xi32>
    %27 = arith.extui %26 : vector<1x256xi1> to vector<1x256xi32>
    %28 = arith.sitofp %27 : vector<1x256xi32> to vector<1x256xf32>
    %c0_7 = arith.constant 0 : index
    %c0_8 = arith.constant 0 : index
    %c0_9 = arith.constant 0 : index
    %29 = vector.load %arg1[%c0_7, %c0_8, %c0_9] : memref<1x4x256xf32, #tpu.memory_space<vmem>>, vector<1x4x256xf32>
    %30 = vector.shape_cast %29 : vector<1x4x256xf32> to vector<4x256xf32>
    %cst_10 = arith.constant 0.000000e+00 : f32
    %31 = vector.broadcast %cst_10 : f32 to vector<1x256xf32>
    %c0_11 = arith.constant 0 : index
    %32 = memref.load %arg2[%c0_11] : memref<8xf32, #tpu.memory_space<smem>>
    %33 = vector.extract_strided_slice %30 {offsets = [0, 0], sizes = [1, 256], strides = [1, 1]} : vector<4x256xf32> to vector<1x256xf32>
    %34 = vector.broadcast %32 : f32 to vector<1x256xf32>
    %35 = arith.mulf %34, %33 : vector<1x256xf32>
    %36 = arith.addf %31, %35 : vector<1x256xf32>
    %c1 = arith.constant 1 : index
    %37 = memref.load %arg2[%c1] : memref<8xf32, #tpu.memory_space<smem>>
    %38 = vector.extract_strided_slice %30 {offsets = [1, 0], sizes = [1, 256], strides = [1, 1]} : vector<4x256xf32> to vector<1x256xf32>
    %39 = vector.broadcast %37 : f32 to vector<1x256xf32>
    %40 = arith.mulf %39, %38 : vector<1x256xf32>
    %41 = arith.addf %36, %40 : vector<1x256xf32>
    %c2 = arith.constant 2 : index
    %42 = memref.load %arg2[%c2] : memref<8xf32, #tpu.memory_space<smem>>
    %43 = vector.extract_strided_slice %30 {offsets = [2, 0], sizes = [1, 256], strides = [1, 1]} : vector<4x256xf32> to vector<1x256xf32>
    %44 = vector.broadcast %42 : f32 to vector<1x256xf32>
    %45 = arith.mulf %44, %43 : vector<1x256xf32>
    %46 = arith.addf %41, %45 : vector<1x256xf32>
    %c3 = arith.constant 3 : index
    %47 = memref.load %arg2[%c3] : memref<8xf32, #tpu.memory_space<smem>>
    %48 = vector.extract_strided_slice %30 {offsets = [3, 0], sizes = [1, 256], strides = [1, 1]} : vector<4x256xf32> to vector<1x256xf32>
    %49 = vector.broadcast %47 : f32 to vector<1x256xf32>
    %50 = arith.mulf %49, %48 : vector<1x256xf32>
    %51 = arith.addf %46, %50 : vector<1x256xf32>
    %c0_12 = arith.constant 0 : index
    %52 = memref.load %arg3[%c0_12] : memref<2xf32, #tpu.memory_space<smem>>
    %53 = vector.broadcast %52 : f32 to vector<1x256xf32>
    %54 = arith.addf %51, %53 : vector<1x256xf32>
    %55 = arith.negf %54 : vector<1x256xf32>
    %56 = math.exp %55 : vector<1x256xf32>
    %cst_13 = arith.constant 1.000000e+00 : f32
    %57 = vector.broadcast %cst_13 : f32 to vector<1x256xf32>
    %58 = arith.addf %57, %56 : vector<1x256xf32>
    %59 = arith.divf %57, %58 : vector<1x256xf32>
    %60 = arith.mulf %54, %59 : vector<1x256xf32>
    %c0_14 = arith.constant 0 : index
    %c128 = arith.constant 128 : index
    %61 = vector.load %arg7[%c0_14, %c128] : memref<2x512xf32, #tpu.memory_space<vmem>>, vector<1x256xf32>
    tpu.vector_store %arg7[%c0_14, %c128], %60 {strides = array<i32>} : memref<2x512xf32, #tpu.memory_space<vmem>>, vector<1x256xf32>,
    %cst_15 = arith.constant 0.000000e+00 : f32
    %62 = vector.broadcast %cst_15 : f32 to vector<1x256xf32>
    %c4 = arith.constant 4 : index
    %63 = memref.load %arg2[%c4] : memref<8xf32, #tpu.memory_space<smem>>
    %64 = vector.extract_strided_slice %30 {offsets = [0, 0], sizes = [1, 256], strides = [1, 1]} : vector<4x256xf32> to vector<1x256xf32>
    %65 = vector.broadcast %63 : f32 to vector<1x256xf32>
    %66 = arith.mulf %65, %64 : vector<1x256xf32>
    %67 = arith.addf %62, %66 : vector<1x256xf32>
    %c5 = arith.constant 5 : index
    %68 = memref.load %arg2[%c5] : memref<8xf32, #tpu.memory_space<smem>>
    %69 = vector.extract_strided_slice %30 {offsets = [1, 0], sizes = [1, 256], strides = [1, 1]} : vector<4x256xf32> to vector<1x256xf32>
    %70 = vector.broadcast %68 : f32 to vector<1x256xf32>
    %71 = arith.mulf %70, %69 : vector<1x256xf32>
    %72 = arith.addf %67, %71 : vector<1x256xf32>
    %c6 = arith.constant 6 : index
    %73 = memref.load %arg2[%c6] : memref<8xf32, #tpu.memory_space<smem>>
    %74 = vector.extract_strided_slice %30 {offsets = [2, 0], sizes = [1, 256], strides = [1, 1]} : vector<4x256xf32> to vector<1x256xf32>
    %75 = vector.broadcast %73 : f32 to vector<1x256xf32>
    %76 = arith.mulf %75, %74 : vector<1x256xf32>
    %77 = arith.addf %72, %76 : vector<1x256xf32>
    %c7 = arith.constant 7 : index
    %78 = memref.load %arg2[%c7] : memref<8xf32, #tpu.memory_space<smem>>
    %79 = vector.extract_strided_slice %30 {offsets = [3, 0], sizes = [1, 256], strides = [1, 1]} : vector<4x256xf32> to vector<1x256xf32>
    %80 = vector.broadcast %78 : f32 to vector<1x256xf32>
    %81 = arith.mulf %80, %79 : vector<1x256xf32>
    %82 = arith.addf %77, %81 : vector<1x256xf32>
    %c1_16 = arith.constant 1 : index
    %83 = memref.load %arg3[%c1_16] : memref<2xf32, #tpu.memory_space<smem>>
    %84 = vector.broadcast %83 : f32 to vector<1x256xf32>
    %85 = arith.addf %82, %84 : vector<1x256xf32>
    %86 = arith.negf %85 : vector<1x256xf32>
    %87 = math.exp %86 : vector<1x256xf32>
    %cst_17 = arith.constant 1.000000e+00 : f32
    %88 = vector.broadcast %cst_17 : f32 to vector<1x256xf32>
    %89 = arith.addf %88, %87 : vector<1x256xf32>
    %90 = arith.divf %88, %89 : vector<1x256xf32>
    %91 = arith.mulf %85, %90 : vector<1x256xf32>
    %c1_18 = arith.constant 1 : index
    %c128_19 = arith.constant 128 : index
    %92 = vector.load %arg7[%c1_18, %c128_19] : memref<2x512xf32, #tpu.memory_space<vmem>>, vector<1x256xf32>
    tpu.vector_store %arg7[%c1_18, %c128_19], %91 {strides = array<i32>} : memref<2x512xf32, #tpu.memory_space<vmem>>, vector<1x256xf32>,
    %cst_20 = arith.constant 0.000000e+00 : f32
    %93 = vector.broadcast %cst_20 : f32 to vector<1x256xf32>
    %cst_21 = arith.constant 0.000000e+00 : f32
    %94 = vector.broadcast %cst_21 : f32 to vector<1x256xf32>
    %cst_22 = arith.constant 0.000000e+00 : f32
    %95 = vector.broadcast %cst_22 : f32 to vector<1x256xf32>
    %cst_23 = arith.constant 0.000000e+00 : f32
    %96 = vector.broadcast %cst_23 : f32 to vector<1x256xf32>
    %c0_24 = arith.constant 0 : index
    %c111 = arith.constant 111 : index
    %97 = vector.load %arg7[%c0_24, %c111] : memref<2x512xf32, #tpu.memory_space<vmem>>, vector<1x256xf32>
    %98 = arith.mulf %97, %24 : vector<1x256xf32>
    %c0_25 = arith.constant 0 : index
    %99 = memref.load %arg4[%c0_25] : memref<72xf32, #tpu.memory_space<smem>>
    %100 = vector.broadcast %99 : f32 to vector<1x256xf32>
    %101 = arith.mulf %100, %98 : vector<1x256xf32>
    %102 = arith.addf %93, %101 : vector<1x256xf32>
    %c2_26 = arith.constant 2 : index
    %103 = memref.load %arg4[%c2_26] : memref<72xf32, #tpu.memory_space<smem>>
    %104 = vector.broadcast %103 : f32 to vector<1x256xf32>
    %105 = arith.mulf %104, %98 : vector<1x256xf32>
    %106 = arith.addf %94, %105 : vector<1x256xf32>
    %c4_27 = arith.constant 4 : index
    %107 = memref.load %arg4[%c4_27] : memref<72xf32, #tpu.memory_space<smem>>
    %108 = vector.broadcast %107 : f32 to vector<1x256xf32>
    %109 = arith.mulf %108, %98 : vector<1x256xf32>
    %110 = arith.addf %95, %109 : vector<1x256xf32>
    %c6_28 = arith.constant 6 : index
    %111 = memref.load %arg4[%c6_28] : memref<72xf32, #tpu.memory_space<smem>>
    %112 = vector.broadcast %111 : f32 to vector<1x256xf32>
    %113 = arith.mulf %112, %98 : vector<1x256xf32>
    %114 = arith.addf %96, %113 : vector<1x256xf32>
    %c1_29 = arith.constant 1 : index
    %c111_30 = arith.constant 111 : index
    %115 = vector.load %arg7[%c1_29, %c111_30] : memref<2x512xf32, #tpu.memory_space<vmem>>, vector<1x256xf32>
    %116 = arith.mulf %115, %24 : vector<1x256xf32>
    %c1_31 = arith.constant 1 : index
    %117 = memref.load %arg4[%c1_31] : memref<72xf32, #tpu.memory_space<smem>>
    %118 = vector.broadcast %117 : f32 to vector<1x256xf32>
    %119 = arith.mulf %118, %116 : vector<1x256xf32>
    %120 = arith.addf %102, %119 : vector<1x256xf32>
    %c3_32 = arith.constant 3 : index
    %121 = memref.load %arg4[%c3_32] : memref<72xf32, #tpu.memory_space<smem>>
    %122 = vector.broadcast %121 : f32 to vector<1x256xf32>
    %123 = arith.mulf %122, %116 : vector<1x256xf32>
    %124 = arith.addf %106, %123 : vector<1x256xf32>
    %c5_33 = arith.constant 5 : index
    %125 = memref.load %arg4[%c5_33] : memref<72xf32, #tpu.memory_space<smem>>
    %126 = vector.broadcast %125 : f32 to vector<1x256xf32>
    %127 = arith.mulf %126, %116 : vector<1x256xf32>
    %128 = arith.addf %110, %127 : vector<1x256xf32>
    %c7_34 = arith.constant 7 : index
    %129 = memref.load %arg4[%c7_34] : memref<72xf32, #tpu.memory_space<smem>>
    %130 = vector.broadcast %129 : f32 to vector<1x256xf32>
    %131 = arith.mulf %130, %116 : vector<1x256xf32>
    %132 = arith.addf %114, %131 : vector<1x256xf32>
    %c0_35 = arith.constant 0 : index
    %c112 = arith.constant 112 : index
    %133 = vector.load %arg7[%c0_35, %c112] : memref<2x512xf32, #tpu.memory_space<vmem>>, vector<1x256xf32>
    %c8 = arith.constant 8 : index
    %134 = memref.load %arg4[%c8] : memref<72xf32, #tpu.memory_space<smem>>
    %135 = vector.broadcast %134 : f32 to vector<1x256xf32>
    %136 = arith.mulf %135, %133 : vector<1x256xf32>
    %137 = arith.addf %120, %136 : vector<1x256xf32>
    %c10 = arith.constant 10 : index
    %138 = memref.load %arg4[%c10] : memref<72xf32, #tpu.memory_space<smem>>
    %139 = vector.broadcast %138 : f32 to vector<1x256xf32>
    %140 = arith.mulf %139, %133 : vector<1x256xf32>
    %141 = arith.addf %124, %140 : vector<1x256xf32>
    %c12 = arith.constant 12 : index
    %142 = memref.load %arg4[%c12] : memref<72xf32, #tpu.memory_space<smem>>
    %143 = vector.broadcast %142 : f32 to vector<1x256xf32>
    %144 = arith.mulf %143, %133 : vector<1x256xf32>
    %145 = arith.addf %128, %144 : vector<1x256xf32>
    %c14 = arith.constant 14 : index
    %146 = memref.load %arg4[%c14] : memref<72xf32, #tpu.memory_space<smem>>
    %147 = vector.broadcast %146 : f32 to vector<1x256xf32>
    %148 = arith.mulf %147, %133 : vector<1x256xf32>
    %149 = arith.addf %132, %148 : vector<1x256xf32>
    %c1_36 = arith.constant 1 : index
    %c112_37 = arith.constant 112 : index
    %150 = vector.load %arg7[%c1_36, %c112_37] : memref<2x512xf32, #tpu.memory_space<vmem>>, vector<1x256xf32>
    %c9 = arith.constant 9 : index
    %151 = memref.load %arg4[%c9] : memref<72xf32, #tpu.memory_space<smem>>
    %152 = vector.broadcast %151 : f32 to vector<1x256xf32>
    %153 = arith.mulf %152, %150 : vector<1x256xf32>
    %154 = arith.addf %137, %153 : vector<1x256xf32>
    %c11 = arith.constant 11 : index
    %155 = memref.load %arg4[%c11] : memref<72xf32, #tpu.memory_space<smem>>
    %156 = vector.broadcast %155 : f32 to vector<1x256xf32>
    %157 = arith.mulf %156, %150 : vector<1x256xf32>
    %158 = arith.addf %141, %157 : vector<1x256xf32>
    %c13 = arith.constant 13 : index
    %159 = memref.load %arg4[%c13] : memref<72xf32, #tpu.memory_space<smem>>
    %160 = vector.broadcast %159 : f32 to vector<1x256xf32>
    %161 = arith.mulf %160, %150 : vector<1x256xf32>
    %162 = arith.addf %145, %161 : vector<1x256xf32>
    %c15 = arith.constant 15 : index
    %163 = memref.load %arg4[%c15] : memref<72xf32, #tpu.memory_space<smem>>
    %164 = vector.broadcast %163 : f32 to vector<1x256xf32>
    %165 = arith.mulf %164, %150 : vector<1x256xf32>
    %166 = arith.addf %149, %165 : vector<1x256xf32>
    %c0_38 = arith.constant 0 : index
    %c113 = arith.constant 113 : index
    %167 = vector.load %arg7[%c0_38, %c113] : memref<2x512xf32, #tpu.memory_space<vmem>>, vector<1x256xf32>
    %168 = arith.mulf %167, %28 : vector<1x256xf32>
    %c16 = arith.constant 16 : index
    %169 = memref.load %arg4[%c16] : memref<72xf32, #tpu.memory_space<smem>>
    %170 = vector.broadcast %169 : f32 to vector<1x256xf32>
    %171 = arith.mulf %170, %168 : vector<1x256xf32>
    %172 = arith.addf %154, %171 : vector<1x256xf32>
    %c18 = arith.constant 18 : index
    %173 = memref.load %arg4[%c18] : memref<72xf32, #tpu.memory_space<smem>>
    %174 = vector.broadcast %173 : f32 to vector<1x256xf32>
    %175 = arith.mulf %174, %168 : vector<1x256xf32>
    %176 = arith.addf %158, %175 : vector<1x256xf32>
    %c20 = arith.constant 20 : index
    %177 = memref.load %arg4[%c20] : memref<72xf32, #tpu.memory_space<smem>>
    %178 = vector.broadcast %177 : f32 to vector<1x256xf32>
    %179 = arith.mulf %178, %168 : vector<1x256xf32>
    %180 = arith.addf %162, %179 : vector<1x256xf32>
    %c22 = arith.constant 22 : index
    %181 = memref.load %arg4[%c22] : memref<72xf32, #tpu.memory_space<smem>>
    %182 = vector.broadcast %181 : f32 to vector<1x256xf32>
    %183 = arith.mulf %182, %168 : vector<1x256xf32>
    %184 = arith.addf %166, %183 : vector<1x256xf32>
    %c1_39 = arith.constant 1 : index
    %c113_40 = arith.constant 113 : index
    %185 = vector.load %arg7[%c1_39, %c113_40] : memref<2x512xf32, #tpu.memory_space<vmem>>, vector<1x256xf32>
    %186 = arith.mulf %185, %28 : vector<1x256xf32>
    %c17 = arith.constant 17 : index
    %187 = memref.load %arg4[%c17] : memref<72xf32, #tpu.memory_space<smem>>
    %188 = vector.broadcast %187 : f32 to vector<1x256xf32>
    %189 = arith.mulf %188, %186 : vector<1x256xf32>
    %190 = arith.addf %172, %189 : vector<1x256xf32>
    %c19 = arith.constant 19 : index
    %191 = memref.load %arg4[%c19] : memref<72xf32, #tpu.memory_space<smem>>
    %192 = vector.broadcast %191 : f32 to vector<1x256xf32>
    %193 = arith.mulf %192, %186 : vector<1x256xf32>
    %194 = arith.addf %176, %193 : vector<1x256xf32>
    %c21 = arith.constant 21 : index
    %195 = memref.load %arg4[%c21] : memref<72xf32, #tpu.memory_space<smem>>
    %196 = vector.broadcast %195 : f32 to vector<1x256xf32>
    %197 = arith.mulf %196, %186 : vector<1x256xf32>
    %198 = arith.addf %180, %197 : vector<1x256xf32>
    %c23 = arith.constant 23 : index
    %199 = memref.load %arg4[%c23] : memref<72xf32, #tpu.memory_space<smem>>
    %200 = vector.broadcast %199 : f32 to vector<1x256xf32>
    %201 = arith.mulf %200, %186 : vector<1x256xf32>
    %202 = arith.addf %184, %201 : vector<1x256xf32>
    %c0_41 = arith.constant 0 : index
    %c127 = arith.constant 127 : index
    %203 = vector.load %arg7[%c0_41, %c127] : memref<2x512xf32, #tpu.memory_space<vmem>>, vector<1x256xf32>
    %204 = arith.mulf %203, %24 : vector<1x256xf32>
    %c24 = arith.constant 24 : index
    %205 = memref.load %arg4[%c24] : memref<72xf32, #tpu.memory_space<smem>>
    %206 = vector.broadcast %205 : f32 to vector<1x256xf32>
    %207 = arith.mulf %206, %204 : vector<1x256xf32>
    %208 = arith.addf %190, %207 : vector<1x256xf32>
    %c26 = arith.constant 26 : index
    %209 = memref.load %arg4[%c26] : memref<72xf32, #tpu.memory_space<smem>>
    %210 = vector.broadcast %209 : f32 to vector<1x256xf32>
    %211 = arith.mulf %210, %204 : vector<1x256xf32>
    %212 = arith.addf %194, %211 : vector<1x256xf32>
    %c28 = arith.constant 28 : index
    %213 = memref.load %arg4[%c28] : memref<72xf32, #tpu.memory_space<smem>>
    %214 = vector.broadcast %213 : f32 to vector<1x256xf32>
    %215 = arith.mulf %214, %204 : vector<1x256xf32>
    %216 = arith.addf %198, %215 : vector<1x256xf32>
    %c30 = arith.constant 30 : index
    %217 = memref.load %arg4[%c30] : memref<72xf32, #tpu.memory_space<smem>>
    %218 = vector.broadcast %217 : f32 to vector<1x256xf32>
    %219 = arith.mulf %218, %204 : vector<1x256xf32>
    %220 = arith.addf %202, %219 : vector<1x256xf32>
    %c1_42 = arith.constant 1 : index
    %c127_43 = arith.constant 127 : index
    %221 = vector.load %arg7[%c1_42, %c127_43] : memref<2x512xf32, #tpu.memory_space<vmem>>, vector<1x256xf32>
    %222 = arith.mulf %221, %24 : vector<1x256xf32>
    %c25 = arith.constant 25 : index
    %223 = memref.load %arg4[%c25] : memref<72xf32, #tpu.memory_space<smem>>
    %224 = vector.broadcast %223 : f32 to vector<1x256xf32>
    %225 = arith.mulf %224, %222 : vector<1x256xf32>
    %226 = arith.addf %208, %225 : vector<1x256xf32>
    %c27 = arith.constant 27 : index
    %227 = memref.load %arg4[%c27] : memref<72xf32, #tpu.memory_space<smem>>
    %228 = vector.broadcast %227 : f32 to vector<1x256xf32>
    %229 = arith.mulf %228, %222 : vector<1x256xf32>
    %230 = arith.addf %212, %229 : vector<1x256xf32>
    %c29 = arith.constant 29 : index
    %231 = memref.load %arg4[%c29] : memref<72xf32, #tpu.memory_space<smem>>
    %232 = vector.broadcast %231 : f32 to vector<1x256xf32>
    %233 = arith.mulf %232, %222 : vector<1x256xf32>
    %234 = arith.addf %216, %233 : vector<1x256xf32>
    %c31 = arith.constant 31 : index
    %235 = memref.load %arg4[%c31] : memref<72xf32, #tpu.memory_space<smem>>
    %236 = vector.broadcast %235 : f32 to vector<1x256xf32>
    %237 = arith.mulf %236, %222 : vector<1x256xf32>
    %238 = arith.addf %220, %237 : vector<1x256xf32>
    %c0_44 = arith.constant 0 : index
    %c128_45 = arith.constant 128 : index
    %239 = vector.load %arg7[%c0_44, %c128_45] : memref<2x512xf32, #tpu.memory_space<vmem>>, vector<1x256xf32>
    %c32 = arith.constant 32 : index
    %240 = memref.load %arg4[%c32] : memref<72xf32, #tpu.memory_space<smem>>
    %241 = vector.broadcast %240 : f32 to vector<1x256xf32>
    %242 = arith.mulf %241, %239 : vector<1x256xf32>
    %243 = arith.addf %226, %242 : vector<1x256xf32>
    %c34 = arith.constant 34 : index
    %244 = memref.load %arg4[%c34] : memref<72xf32, #tpu.memory_space<smem>>
    %245 = vector.broadcast %244 : f32 to vector<1x256xf32>
    %246 = arith.mulf %245, %239 : vector<1x256xf32>
    %247 = arith.addf %230, %246 : vector<1x256xf32>
    %c36 = arith.constant 36 : index
    %248 = memref.load %arg4[%c36] : memref<72xf32, #tpu.memory_space<smem>>
    %249 = vector.broadcast %248 : f32 to vector<1x256xf32>
    %250 = arith.mulf %249, %239 : vector<1x256xf32>
    %251 = arith.addf %234, %250 : vector<1x256xf32>
    %c38 = arith.constant 38 : index
    %252 = memref.load %arg4[%c38] : memref<72xf32, #tpu.memory_space<smem>>
    %253 = vector.broadcast %252 : f32 to vector<1x256xf32>
    %254 = arith.mulf %253, %239 : vector<1x256xf32>
    %255 = arith.addf %238, %254 : vector<1x256xf32>
    %c1_46 = arith.constant 1 : index
    %c128_47 = arith.constant 128 : index
    %256 = vector.load %arg7[%c1_46, %c128_47] : memref<2x512xf32, #tpu.memory_space<vmem>>, vector<1x256xf32>
    %c33 = arith.constant 33 : index
    %257 = memref.load %arg4[%c33] : memref<72xf32, #tpu.memory_space<smem>>
    %258 = vector.broadcast %257 : f32 to vector<1x256xf32>
    %259 = arith.mulf %258, %256 : vector<1x256xf32>
    %260 = arith.addf %243, %259 : vector<1x256xf32>
    %c35 = arith.constant 35 : index
    %261 = memref.load %arg4[%c35] : memref<72xf32, #tpu.memory_space<smem>>
    %262 = vector.broadcast %261 : f32 to vector<1x256xf32>
    %263 = arith.mulf %262, %256 : vector<1x256xf32>
    %264 = arith.addf %247, %263 : vector<1x256xf32>
    %c37 = arith.constant 37 : index
    %265 = memref.load %arg4[%c37] : memref<72xf32, #tpu.memory_space<smem>>
    %266 = vector.broadcast %265 : f32 to vector<1x256xf32>
    %267 = arith.mulf %266, %256 : vector<1x256xf32>
    %268 = arith.addf %251, %267 : vector<1x256xf32>
    %c39 = arith.constant 39 : index
    %269 = memref.load %arg4[%c39] : memref<72xf32, #tpu.memory_space<smem>>
    %270 = vector.broadcast %269 : f32 to vector<1x256xf32>
    %271 = arith.mulf %270, %256 : vector<1x256xf32>
    %272 = arith.addf %255, %271 : vector<1x256xf32>
    %c0_48 = arith.constant 0 : index
    %c129 = arith.constant 129 : index
    %273 = vector.load %arg7[%c0_48, %c129] : memref<2x512xf32, #tpu.memory_space<vmem>>, vector<1x256xf32>
    %274 = arith.mulf %273, %28 : vector<1x256xf32>
    %c40 = arith.constant 40 : index
    %275 = memref.load %arg4[%c40] : memref<72xf32, #tpu.memory_space<smem>>
    %276 = vector.broadcast %275 : f32 to vector<1x256xf32>
    %277 = arith.mulf %276, %274 : vector<1x256xf32>
    %278 = arith.addf %260, %277 : vector<1x256xf32>
    %c42 = arith.constant 42 : index
    %279 = memref.load %arg4[%c42] : memref<72xf32, #tpu.memory_space<smem>>
    %280 = vector.broadcast %279 : f32 to vector<1x256xf32>
    %281 = arith.mulf %280, %274 : vector<1x256xf32>
    %282 = arith.addf %264, %281 : vector<1x256xf32>
    %c44 = arith.constant 44 : index
    %283 = memref.load %arg4[%c44] : memref<72xf32, #tpu.memory_space<smem>>
    %284 = vector.broadcast %283 : f32 to vector<1x256xf32>
    %285 = arith.mulf %284, %274 : vector<1x256xf32>
    %286 = arith.addf %268, %285 : vector<1x256xf32>
    %c46 = arith.constant 46 : index
    %287 = memref.load %arg4[%c46] : memref<72xf32, #tpu.memory_space<smem>>
    %288 = vector.broadcast %287 : f32 to vector<1x256xf32>
    %289 = arith.mulf %288, %274 : vector<1x256xf32>
    %290 = arith.addf %272, %289 : vector<1x256xf32>
    %c1_49 = arith.constant 1 : index
    %c129_50 = arith.constant 129 : index
    %291 = vector.load %arg7[%c1_49, %c129_50] : memref<2x512xf32, #tpu.memory_space<vmem>>, vector<1x256xf32>
    %292 = arith.mulf %291, %28 : vector<1x256xf32>
    %c41 = arith.constant 41 : index
    %293 = memref.load %arg4[%c41] : memref<72xf32, #tpu.memory_space<smem>>
    %294 = vector.broadcast %293 : f32 to vector<1x256xf32>
    %295 = arith.mulf %294, %292 : vector<1x256xf32>
    %296 = arith.addf %278, %295 : vector<1x256xf32>
    %c43 = arith.constant 43 : index
    %297 = memref.load %arg4[%c43] : memref<72xf32, #tpu.memory_space<smem>>
    %298 = vector.broadcast %297 : f32 to vector<1x256xf32>
    %299 = arith.mulf %298, %292 : vector<1x256xf32>
    %300 = arith.addf %282, %299 : vector<1x256xf32>
    %c45 = arith.constant 45 : index
    %301 = memref.load %arg4[%c45] : memref<72xf32, #tpu.memory_space<smem>>
    %302 = vector.broadcast %301 : f32 to vector<1x256xf32>
    %303 = arith.mulf %302, %292 : vector<1x256xf32>
    %304 = arith.addf %286, %303 : vector<1x256xf32>
    %c47 = arith.constant 47 : index
    %305 = memref.load %arg4[%c47] : memref<72xf32, #tpu.memory_space<smem>>
    %306 = vector.broadcast %305 : f32 to vector<1x256xf32>
    %307 = arith.mulf %306, %292 : vector<1x256xf32>
    %308 = arith.addf %290, %307 : vector<1x256xf32>
    %c0_51 = arith.constant 0 : index
    %c143 = arith.constant 143 : index
    %309 = vector.load %arg7[%c0_51, %c143] : memref<2x512xf32, #tpu.memory_space<vmem>>, vector<1x256xf32>
    %310 = arith.mulf %309, %24 : vector<1x256xf32>
    %c48 = arith.constant 48 : index
    %311 = memref.load %arg4[%c48] : memref<72xf32, #tpu.memory_space<smem>>
    %312 = vector.broadcast %311 : f32 to vector<1x256xf32>
    %313 = arith.mulf %312, %310 : vector<1x256xf32>
    %314 = arith.addf %296, %313 : vector<1x256xf32>
    %c50 = arith.constant 50 : index
    %315 = memref.load %arg4[%c50] : memref<72xf32, #tpu.memory_space<smem>>
    %316 = vector.broadcast %315 : f32 to vector<1x256xf32>
    %317 = arith.mulf %316, %310 : vector<1x256xf32>
    %318 = arith.addf %300, %317 : vector<1x256xf32>
    %c52 = arith.constant 52 : index
    %319 = memref.load %arg4[%c52] : memref<72xf32, #tpu.memory_space<smem>>
    %320 = vector.broadcast %319 : f32 to vector<1x256xf32>
    %321 = arith.mulf %320, %310 : vector<1x256xf32>
    %322 = arith.addf %304, %321 : vector<1x256xf32>
    %c54 = arith.constant 54 : index
    %323 = memref.load %arg4[%c54] : memref<72xf32, #tpu.memory_space<smem>>
    %324 = vector.broadcast %323 : f32 to vector<1x256xf32>
    %325 = arith.mulf %324, %310 : vector<1x256xf32>
    %326 = arith.addf %308, %325 : vector<1x256xf32>
    %c1_52 = arith.constant 1 : index
    %c143_53 = arith.constant 143 : index
    %327 = vector.load %arg7[%c1_52, %c143_53] : memref<2x512xf32, #tpu.memory_space<vmem>>, vector<1x256xf32>
    %328 = arith.mulf %327, %24 : vector<1x256xf32>
    %c49 = arith.constant 49 : index
    %329 = memref.load %arg4[%c49] : memref<72xf32, #tpu.memory_space<smem>>
    %330 = vector.broadcast %329 : f32 to vector<1x256xf32>
    %331 = arith.mulf %330, %328 : vector<1x256xf32>
    %332 = arith.addf %314, %331 : vector<1x256xf32>
    %c51 = arith.constant 51 : index
    %333 = memref.load %arg4[%c51] : memref<72xf32, #tpu.memory_space<smem>>
    %334 = vector.broadcast %333 : f32 to vector<1x256xf32>
    %335 = arith.mulf %334, %328 : vector<1x256xf32>
    %336 = arith.addf %318, %335 : vector<1x256xf32>
    %c53 = arith.constant 53 : index
    %337 = memref.load %arg4[%c53] : memref<72xf32, #tpu.memory_space<smem>>
    %338 = vector.broadcast %337 : f32 to vector<1x256xf32>
    %339 = arith.mulf %338, %328 : vector<1x256xf32>
    %340 = arith.addf %322, %339 : vector<1x256xf32>
    %c55 = arith.constant 55 : index
    %341 = memref.load %arg4[%c55] : memref<72xf32, #tpu.memory_space<smem>>
    %342 = vector.broadcast %341 : f32 to vector<1x256xf32>
    %343 = arith.mulf %342, %328 : vector<1x256xf32>
    %344 = arith.addf %326, %343 : vector<1x256xf32>
    %c0_54 = arith.constant 0 : index
    %c144 = arith.constant 144 : index
    %345 = vector.load %arg7[%c0_54, %c144] : memref<2x512xf32, #tpu.memory_space<vmem>>, vector<1x256xf32>
    %c56 = arith.constant 56 : index
    %346 = memref.load %arg4[%c56] : memref<72xf32, #tpu.memory_space<smem>>
    %347 = vector.broadcast %346 : f32 to vector<1x256xf32>
    %348 = arith.mulf %347, %345 : vector<1x256xf32>
    %349 = arith.addf %332, %348 : vector<1x256xf32>
    %c58 = arith.constant 58 : index
    %350 = memref.load %arg4[%c58] : memref<72xf32, #tpu.memory_space<smem>>
    %351 = vector.broadcast %350 : f32 to vector<1x256xf32>
    %352 = arith.mulf %351, %345 : vector<1x256xf32>
    %353 = arith.addf %336, %352 : vector<1x256xf32>
    %c60 = arith.constant 60 : index
    %354 = memref.load %arg4[%c60] : memref<72xf32, #tpu.memory_space<smem>>
    %355 = vector.broadcast %354 : f32 to vector<1x256xf32>
    %356 = arith.mulf %355, %345 : vector<1x256xf32>
    %357 = arith.addf %340, %356 : vector<1x256xf32>
    %c62 = arith.constant 62 : index
    %358 = memref.load %arg4[%c62] : memref<72xf32, #tpu.memory_space<smem>>
    %359 = vector.broadcast %358 : f32 to vector<1x256xf32>
    %360 = arith.mulf %359, %345 : vector<1x256xf32>
    %361 = arith.addf %344, %360 : vector<1x256xf32>
    %c1_55 = arith.constant 1 : index
    %c144_56 = arith.constant 144 : index
    %362 = vector.load %arg7[%c1_55, %c144_56] : memref<2x512xf32, #tpu.memory_space<vmem>>, vector<1x256xf32>
    %c57 = arith.constant 57 : index
    %363 = memref.load %arg4[%c57] : memref<72xf32, #tpu.memory_space<smem>>
    %364 = vector.broadcast %363 : f32 to vector<1x256xf32>
    %365 = arith.mulf %364, %362 : vector<1x256xf32>
    %366 = arith.addf %349, %365 : vector<1x256xf32>
    %c59 = arith.constant 59 : index
    %367 = memref.load %arg4[%c59] : memref<72xf32, #tpu.memory_space<smem>>
    %368 = vector.broadcast %367 : f32 to vector<1x256xf32>
    %369 = arith.mulf %368, %362 : vector<1x256xf32>
    %370 = arith.addf %353, %369 : vector<1x256xf32>
    %c61 = arith.constant 61 : index
    %371 = memref.load %arg4[%c61] : memref<72xf32, #tpu.memory_space<smem>>
    %372 = vector.broadcast %371 : f32 to vector<1x256xf32>
    %373 = arith.mulf %372, %362 : vector<1x256xf32>
    %374 = arith.addf %357, %373 : vector<1x256xf32>
    %c63 = arith.constant 63 : index
    %375 = memref.load %arg4[%c63] : memref<72xf32, #tpu.memory_space<smem>>
    %376 = vector.broadcast %375 : f32 to vector<1x256xf32>
    %377 = arith.mulf %376, %362 : vector<1x256xf32>
    %378 = arith.addf %361, %377 : vector<1x256xf32>
    %c0_57 = arith.constant 0 : index
    %c145 = arith.constant 145 : index
    %379 = vector.load %arg7[%c0_57, %c145] : memref<2x512xf32, #tpu.memory_space<vmem>>, vector<1x256xf32>
    %380 = arith.mulf %379, %28 : vector<1x256xf32>
    %c64 = arith.constant 64 : index
    %381 = memref.load %arg4[%c64] : memref<72xf32, #tpu.memory_space<smem>>
    %382 = vector.broadcast %381 : f32 to vector<1x256xf32>
    %383 = arith.mulf %382, %380 : vector<1x256xf32>
    %384 = arith.addf %366, %383 : vector<1x256xf32>
    %c66 = arith.constant 66 : index
    %385 = memref.load %arg4[%c66] : memref<72xf32, #tpu.memory_space<smem>>
    %386 = vector.broadcast %385 : f32 to vector<1x256xf32>
    %387 = arith.mulf %386, %380 : vector<1x256xf32>
    %388 = arith.addf %370, %387 : vector<1x256xf32>
    %c68 = arith.constant 68 : index
    %389 = memref.load %arg4[%c68] : memref<72xf32, #tpu.memory_space<smem>>
    %390 = vector.broadcast %389 : f32 to vector<1x256xf32>
    %391 = arith.mulf %390, %380 : vector<1x256xf32>
    %392 = arith.addf %374, %391 : vector<1x256xf32>
    %c70 = arith.constant 70 : index
    %393 = memref.load %arg4[%c70] : memref<72xf32, #tpu.memory_space<smem>>
    %394 = vector.broadcast %393 : f32 to vector<1x256xf32>
    %395 = arith.mulf %394, %380 : vector<1x256xf32>
    %396 = arith.addf %378, %395 : vector<1x256xf32>
    %c1_58 = arith.constant 1 : index
    %c145_59 = arith.constant 145 : index
    %397 = vector.load %arg7[%c1_58, %c145_59] : memref<2x512xf32, #tpu.memory_space<vmem>>, vector<1x256xf32>
    %398 = arith.mulf %397, %28 : vector<1x256xf32>
    %c65 = arith.constant 65 : index
    %399 = memref.load %arg4[%c65] : memref<72xf32, #tpu.memory_space<smem>>
    %400 = vector.broadcast %399 : f32 to vector<1x256xf32>
    %401 = arith.mulf %400, %398 : vector<1x256xf32>
    %402 = arith.addf %384, %401 : vector<1x256xf32>
    %c67 = arith.constant 67 : index
    %403 = memref.load %arg4[%c67] : memref<72xf32, #tpu.memory_space<smem>>
    %404 = vector.broadcast %403 : f32 to vector<1x256xf32>
    %405 = arith.mulf %404, %398 : vector<1x256xf32>
    %406 = arith.addf %388, %405 : vector<1x256xf32>
    %c69 = arith.constant 69 : index
    %407 = memref.load %arg4[%c69] : memref<72xf32, #tpu.memory_space<smem>>
    %408 = vector.broadcast %407 : f32 to vector<1x256xf32>
    %409 = arith.mulf %408, %398 : vector<1x256xf32>
    %410 = arith.addf %392, %409 : vector<1x256xf32>
    %c71 = arith.constant 71 : index
    %411 = memref.load %arg4[%c71] : memref<72xf32, #tpu.memory_space<smem>>
    %412 = vector.broadcast %411 : f32 to vector<1x256xf32>
    %413 = arith.mulf %412, %398 : vector<1x256xf32>
    %414 = arith.addf %396, %413 : vector<1x256xf32>
    %c0_60 = arith.constant 0 : index
    %415 = memref.load %arg5[%c0_60] : memref<4xf32, #tpu.memory_space<smem>>
    %416 = vector.broadcast %415 : f32 to vector<1x256xf32>
    %417 = arith.addf %402, %416 : vector<1x256xf32>
    %418 = arith.negf %417 : vector<1x256xf32>
    %419 = math.exp %418 : vector<1x256xf32>
    %cst_61 = arith.constant 1.000000e+00 : f32
    %420 = vector.broadcast %cst_61 : f32 to vector<1x256xf32>
    %421 = arith.addf %420, %419 : vector<1x256xf32>
    %422 = arith.divf %420, %421 : vector<1x256xf32>
    %423 = arith.mulf %417, %422 : vector<1x256xf32>
    %424 = vector.extract_strided_slice %30 {offsets = [0, 0], sizes = [1, 256], strides = [1, 1]} : vector<4x256xf32> to vector<1x256xf32>
    %425 = arith.addf %423, %424 : vector<1x256xf32>
    %c1_62 = arith.constant 1 : index
    %426 = memref.load %arg5[%c1_62] : memref<4xf32, #tpu.memory_space<smem>>
    %427 = vector.broadcast %426 : f32 to vector<1x256xf32>
    %428 = arith.addf %406, %427 : vector<1x256xf32>
    %429 = arith.negf %428 : vector<1x256xf32>
    %430 = math.exp %429 : vector<1x256xf32>
    %cst_63 = arith.constant 1.000000e+00 : f32
    %431 = vector.broadcast %cst_63 : f32 to vector<1x256xf32>
    %432 = arith.addf %431, %430 : vector<1x256xf32>
    %433 = arith.divf %431, %432 : vector<1x256xf32>
    %434 = arith.mulf %428, %433 : vector<1x256xf32>
    %435 = vector.extract_strided_slice %30 {offsets = [1, 0], sizes = [1, 256], strides = [1, 1]} : vector<4x256xf32> to vector<1x256xf32>
    %436 = arith.addf %434, %435 : vector<1x256xf32>
    %c2_64 = arith.constant 2 : index
    %437 = memref.load %arg5[%c2_64] : memref<4xf32, #tpu.memory_space<smem>>
    %438 = vector.broadcast %437 : f32 to vector<1x256xf32>
    %439 = arith.addf %410, %438 : vector<1x256xf32>
    %440 = arith.negf %439 : vector<1x256xf32>
    %441 = math.exp %440 : vector<1x256xf32>
    %cst_65 = arith.constant 1.000000e+00 : f32
    %442 = vector.broadcast %cst_65 : f32 to vector<1x256xf32>
    %443 = arith.addf %442, %441 : vector<1x256xf32>
    %444 = arith.divf %442, %443 : vector<1x256xf32>
    %445 = arith.mulf %439, %444 : vector<1x256xf32>
    %446 = vector.extract_strided_slice %30 {offsets = [2, 0], sizes = [1, 256], strides = [1, 1]} : vector<4x256xf32> to vector<1x256xf32>
    %447 = arith.addf %445, %446 : vector<1x256xf32>
    %c3_66 = arith.constant 3 : index
    %448 = memref.load %arg5[%c3_66] : memref<4xf32, #tpu.memory_space<smem>>
    %449 = vector.broadcast %448 : f32 to vector<1x256xf32>
    %450 = arith.addf %414, %449 : vector<1x256xf32>
    %451 = arith.negf %450 : vector<1x256xf32>
    %452 = math.exp %451 : vector<1x256xf32>
    %cst_67 = arith.constant 1.000000e+00 : f32
    %453 = vector.broadcast %cst_67 : f32 to vector<1x256xf32>
    %454 = arith.addf %453, %452 : vector<1x256xf32>
    %455 = arith.divf %453, %454 : vector<1x256xf32>
    %456 = arith.mulf %450, %455 : vector<1x256xf32>
    %457 = vector.extract_strided_slice %30 {offsets = [3, 0], sizes = [1, 256], strides = [1, 1]} : vector<4x256xf32> to vector<1x256xf32>
    %458 = arith.addf %456, %457 : vector<1x256xf32>
    %459 = tpu.concatenate %425, %436, %447, %458 in 0 : vector<1x256xf32>, vector<1x256xf32>, vector<1x256xf32>, vector<1x256xf32> -> vector<4x256xf32>
    %c0_68 = arith.constant 0 : index
    %c0_69 = arith.constant 0 : index
    %c0_70 = arith.constant 0 : index
    %460 = vector.load %arg6[%c0_68, %c0_69, %c0_70] : memref<1x4x256xf32, #tpu.memory_space<vmem>>, vector<1x4x256xf32>
    %461 = vector.shape_cast %460 : vector<1x4x256xf32> to vector<4x256xf32>
    %462 = vector.shape_cast %459 : vector<4x256xf32> to vector<1x4x256xf32>
    tpu.vector_store %arg6[%c0_68, %c0_69, %c0_70], %462 {strides = array<i32>} : memref<1x4x256xf32, #tpu.memory_space<vmem>>, vector<1x4x256xf32>,
    return
  }
  func.func @transform_0(%arg0: i32) -> (i32, i32, i32) {
    %c0_i32 = arith.constant 0 : i32
    %c0_i32_0 = arith.constant 0 : i32
    %c0_i32_1 = arith.constant 0 : i32
    return %arg0, %c0_i32, %c0_i32_0 : i32, i32, i32
  }
  func.func @transform_1(%arg0: i32) -> i32 {
    %c0_i32 = arith.constant 0 : i32
    %c0_i32_0 = arith.constant 0 : i32
    return %c0_i32 : i32
  }
  func.func @transform_2(%arg0: i32) -> i32 {
    %c0_i32 = arith.constant 0 : i32
    %c0_i32_0 = arith.constant 0 : i32
    return %c0_i32 : i32
  }
  func.func @transform_3(%arg0: i32) -> i32 {
    %c0_i32 = arith.constant 0 : i32
    %c0_i32_0 = arith.constant 0 : i32
    return %c0_i32 : i32
  }
  func.func @transform_4(%arg0: i32) -> i32 {
    %c0_i32 = arith.constant 0 : i32
    %c0_i32_0 = arith.constant 0 : i32
    return %c0_i32 : i32
  }
  func.func @transform_5(%arg0: i32) -> (i32, i32, i32) {
    %c0_i32 = arith.constant 0 : i32
    %c0_i32_0 = arith.constant 0 : i32
    %c0_i32_1 = arith.constant 0 : i32
    return %arg0, %c0_i32, %c0_i32_0 : i32, i32, i32
  }
}

</mosaic_0001>

<llo_original>
// kernel: tpu_custom_call.1
$region0: #{tpu_custom_call.1}
  #allocation0 [shape = 'u32[]', space=smem, size = 0x4, offset = 0x4, fixed_abs, tag = 'smem constant byte address 0x4 - core index']
  #allocation1 [shape = 'u32[144,128]{1,0:T(1,128)}', space=vmem, size = 0x12000, scoped, tag = 'internal scratch']
  #allocation2 [shape = 'f32[2,512]{1,0:T(2,128)}', space=vmem, size = 0x1000, scoped, tag = 'scratch operand']
  %s0 = inlined_call_operand.hbm [shape: f32[2,4,256], index: 0, kind: input, shape index: {}]
  %s1 = inlined_call_operand.vmem [shape: f32[8], index: 1, kind: input, shape index: {}]
  %s2 = inlined_call_operand.vmem [shape: f32[2], index: 2, kind: input, shape index: {}]
  %s3 = inlined_call_operand.vmem [shape: f32[72], index: 3, kind: input, shape index: {}]
  %s4 = inlined_call_operand.vmem [shape: f32[4], index: 4, kind: input, shape index: {}]
  %s5 = inlined_call_operand.hbm [shape: f32[2,4,256], index: 5, kind: output, shape index: {}]
  %s6 = sld [smem:[#allocation0]]
  $region73: #{tpu_custom_call.1} parent=0
    _
  %s8 = ssub.s32 1, %s6
  %s9 = scalar_select 0, %s8, %s6
  $region1: #{tpu_custom_call.1} parent=0
    #allocation3 [shape = 'u8[8192]{0}', space=vmem, size = 0x2000, scoped, tag = 'input window, operand 0']
    #allocation4 [shape = 's32[2]{0}', space=sflag, size = 0x8, scoped, tag = 'scoped memory for tpu_custom_call.1']
    #allocation5 [shape = 's32[2]{0}', space=sflag, size = 0x8, scoped, tag = 'scoped memory for tpu_custom_call.1']
    #allocation6 [shape = 's32[2]{0}', space=sflag, size = 0x8, scoped, tag = 'scoped memory for tpu_custom_call.1']
    #allocation7 [shape = 'u8[512]{0}', space=smem, size = 0x200, scoped, tag = 'input window, operand 1, single buffered']
    #allocation8 [shape = 'u8[512]{0}', space=smem, size = 0x200, scoped, tag = 'input window, operand 2, single buffered']
    #allocation9 [shape = 's32[1]{0}', space=sflag, size = 0x4, scoped, tag = 'scoped memory for tpu_custom_call.1']
    #allocation10 [shape = 'u8[512]{0}', space=smem, size = 0x200, scoped, tag = 'input window, operand 3, single buffered']
    #allocation11 [shape = 'u8[512]{0}', space=smem, size = 0x200, scoped, tag = 'input window, operand 4, single buffered']
    #allocation12 [shape = 's32[1]{0}', space=sflag, size = 0x4, scoped, tag = 'scoped memory for tpu_custom_call.1']
    #allocation13 [shape = 'u8[8192]{0}', space=vmem, size = 0x2000, scoped, tag = 'output window, operand 0']
    %10 = vsyncpa [#allocation4], 0
    %s11 = scalar_lea.sflag [#allocation4], 1
    %12 = vsyncpa %s11, 0
    %13 = vsyncpa [#allocation6], 0
    %14 = vsyncpa [#allocation9], 0
    %15 = vsyncpa [#allocation12], 0
    %16 = vsyncpa [#allocation5], 0
    %s17 = scalar_lea.sflag [#allocation5], 1
    %18 = vsyncpa %s17, 0
    loop: start=0, step=1, limit=4
    $region2: #{tpu_custom_call.1} parent=1 // loop_pre_header
      _
    $region3: #{tpu_custom_call.1} parent=1 // loop_header
      %s20 = sphi 0, %s24
      %p21 = scmp.ge.s32.totalorder %s20, 4
      %s30 = sphi 0, %s32
      %s33 = sphi 0, %s30
      %s34 = sphi 0, %s33
      %s50 = sphi 0, %s34
      %s54 = sphi 0, %s54
      %s56 = sphi 0, %s54
      %s57 = sphi 0, %s56
      %s71 = sphi 0, %s57
      %s75 = sphi 0, %s75
      %s77 = sphi 0, %s75
      %s78 = sphi 0, %s77
      %s92 = sphi 0, %s78
      %s96 = sphi 0, %s96
      %s98 = sphi 0, %s96
      %s99 = sphi 0, %s98
      %s113 = sphi 0, %s99
      %s117 = sphi 0, %s117
      %s119 = sphi 0, %s117
      %s120 = sphi 0, %s119
      %s134 = sphi 0, %s120
      %s140 = sphi 0, %s142
      %s143 = sphi 0, %s140
      %s144 = sphi 0, %s143
      %s160 = sphi 0, %s144
    $region4: #{tpu_custom_call.1} parent=1 // loop_header_branch
      %23 = sbr.rel (%p21) target = $region8
    $region5: #{tpu_custom_call.1} parent=1 // loop_body
      %s25 = ssub.s32 %s20, 1
      %s26 = ssub.s32 %s20, 2
      %s27 = sadd.s32 %s20, 1
      %s28 = ssub.s32 %s20, %s27
      %p29 = scmp.eq.s32.totalorder %s28, 0
      %s31 = sadd.s32 %s30, 1
      %s32 = scalar_select %p29, %s30, %s31
      %p35 = pneg %p29
      %p36 = scmp.eq.s32.totalorder %s20, 1
      %p37 = por %p35, %p36
      %p38 = scmp.ne.s32.totalorder %s30, %s33
      %p39 = scmp.eq.s32.totalorder %s20, 0
      %p40 = por %p38, %p39
      %p41 = scmp.ne.s32.totalorder %s30, %s33
      %p42 = scmp.eq.s32.totalorder %s25, 1
      %p43 = por %p41, %p42
      %p44 = scmp.ne.s32.totalorder %s33, %s34
      %p45 = scmp.eq.s32.totalorder %s25, 0
      %p46 = por %p44, %p45
      %p47 = scmp.ne.s32.totalorder %s33, %s34
      %p48 = scmp.eq.s32.totalorder %s26, 1
      %p49 = por %p47, %p48
      %p51 = scmp.ne.s32.totalorder %s34, %s50
      %p52 = scmp.eq.s32.totalorder %s26, 0
      %p53 = por %p51, %p52
      %s55 = sadd.s32 %s54, 1
      %p58 = scmp.eq.s32.totalorder %s20, 1
      %p59 = scmp.ne.s32.totalorder %s54, %s56
      %p60 = scmp.eq.s32.totalorder %s20, 0
      %p61 = por %p59, %p60
      %p62 = scmp.ne.s32.totalorder %s54, %s56
      %p63 = scmp.eq.s32.totalorder %s25, 1
      %p64 = por %p62, %p63
      %p65 = scmp.ne.s32.totalorder %s56, %s57
      %p66 = scmp.eq.s32.totalorder %s25, 0
      %p67 = por %p65, %p66
      %p68 = scmp.ne.s32.totalorder %s56, %s57
      %p69 = scmp.eq.s32.totalorder %s26, 1
      %p70 = por %p68, %p69
      %p72 = scmp.ne.s32.totalorder %s57, %s71
      %p73 = scmp.eq.s32.totalorder %s26, 0
      %p74 = por %p72, %p73
      %s76 = sadd.s32 %s75, 1
      %p79 = scmp.eq.s32.totalorder %s20, 1
      %p80 = scmp.ne.s32.totalorder %s75, %s77
      %p81 = scmp.eq.s32.totalorder %s20, 0
      %p82 = por %p80, %p81
      %p83 = scmp.ne.s32.totalorder %s75, %s77
      %p84 = scmp.eq.s32.totalorder %s25, 1
      %p85 = por %p83, %p84
      %p86 = scmp.ne.s32.totalorder %s77, %s78
      %p87 = scmp.eq.s32.totalorder %s25, 0
      %p88 = por %p86, %p87
      %p89 = scmp.ne.s32.totalorder %s77, %s78
      %p90 = scmp.eq.s32.totalorder %s26, 1
      %p91 = por %p89, %p90
      %p93 = scmp.ne.s32.totalorder %s78, %s92
      %p94 = scmp.eq.s32.totalorder %s26, 0
      %p95 = por %p93, %p94
      %s97 = sadd.s32 %s96, 1
      %p100 = scmp.eq.s32.totalorder %s20, 1
      %p101 = scmp.ne.s32.totalorder %s96, %s98
      %p102 = scmp.eq.s32.totalorder %s20, 0
      %p103 = por %p101, %p102
      %p104 = scmp.ne.s32.totalorder %s96, %s98
      %p105 = scmp.eq.s32.totalorder %s25, 1
      %p106 = por %p104, %p105
      %p107 = scmp.ne.s32.totalorder %s98, %s99
      %p108 = scmp.eq.s32.totalorder %s25, 0
      %p109 = por %p107, %p108
      %p110 = scmp.ne.s32.totalorder %s98, %s99
      %p111 = scmp.eq.s32.totalorder %s26, 1
      %p112 = por %p110, %p111
      %p114 = scmp.ne.s32.totalorder %s99, %s113
      %p115 = scmp.eq.s32.totalorder %s26, 0
      %p116 = por %p114, %p115
      %s118 = sadd.s32 %s117, 1
      %p121 = scmp.eq.s32.totalorder %s20, 1
      %p122 = scmp.ne.s32.totalorder %s117, %s119
      %p123 = scmp.eq.s32.totalorder %s20, 0
      %p124 = por %p122, %p123
      %p125 = scmp.ne.s32.totalorder %s117, %s119
      %p126 = scmp.eq.s32.totalorder %s25, 1
      %p127 = por %p125, %p126
      %p128 = scmp.ne.s32.totalorder %s119, %s120
      %p129 = scmp.eq.s32.totalorder %s25, 0
      %p130 = por %p128, %p129
      %p131 = scmp.ne.s32.totalorder %s119, %s120
      %p132 = scmp.eq.s32.totalorder %s26, 1
      %p133 = por %p131, %p132
      %p135 = scmp.ne.s32.totalorder %s120, %s134
      %p136 = scmp.eq.s32.totalorder %s26, 0
      %p137 = por %p135, %p136
      %s138 = ssub.s32 %s20, %s27
      %p139 = scmp.eq.s32.totalorder %s138, 0
      %s141 = sadd.s32 %s140, 1
      %s142 = scalar_select %p139, %s140, %s141
      %p145 = pneg %p139
      %p146 = scmp.eq.s32.totalorder %s20, 1
      %p147 = por %p145, %p146
      %p148 = scmp.ne.s32.totalorder %s140, %s143
      %p149 = scmp.eq.s32.totalorder %s20, 0
      %p150 = por %p148, %p149
      %p151 = scmp.ne.s32.totalorder %s140, %s143
      %p152 = scmp.eq.s32.totalorder %s25, 1
      %p153 = por %p151, %p152
      %p154 = scmp.ne.s32.totalorder %s143, %s144
      %p155 = scmp.eq.s32.totalorder %s25, 0
      %p156 = por %p154, %p155
      %p157 = scmp.ne.s32.totalorder %s143, %s144
      %p158 = scmp.eq.s32.totalorder %s26, 1
      %p159 = por %p157, %p158
      %p161 = scmp.ne.s32.totalorder %s144, %s160
      %p162 = scmp.eq.s32.totalorder %s26, 0
      %p163 = por %p161, %p162
      %p164 = scmp.le.s32.totalorder 1, %s20
      %p165 = scmp.lt.s32.totalorder %s20, 3
      %p166 = pnand %p164, %p165
      %p167 = pneg %p166
      // Predicated region
      $region9: #{tpu_custom_call.1} parent=5 // pred_check
        _
      $region10: #{tpu_custom_call.1} parent=5 // pred_check_branch
        %169 = sbr.rel (%p166) target = $region12
      $region11: #{tpu_custom_call.1} parent=5 // pred_region
        %s170 = ssub.s32 %s20, 1
        // Predicated region
        $region13: #{tpu_custom_call.1} parent=11 // pred_check
          %p171 = pneg %p67
        $region14: #{tpu_custom_call.1} parent=11 // pred_check_branch
          %173 = sbr.rel (%p171) target = $region16
        $region15: #{tpu_custom_call.1} parent=11 // pred_region
          %s175 = ssub.s32 16, 16
          %176 = vsyncadd [#allocation6], %s175
          %s178 = sshll.u32 %s1, 4
          %s179 = int_to_ptr.vmem [resolvable:$true] %s178
          %181 = dma.vmem_to_smem %s179, 16, [#allocation7], [#allocation6]
        $region16: #{tpu_custom_call.1} parent=11 // pred_fallthru
          _
        // Predicated region
        $region17: #{tpu_custom_call.1} parent=11 // pred_check
          %p182 = pneg %p88
        $region18: #{tpu_custom_call.1} parent=11 // pred_check_branch
          %184 = sbr.rel (%p182) target = $region20
        $region19: #{tpu_custom_call.1} parent=11 // pred_region
          %s186 = ssub.s32 16, 16
          %187 = vsyncadd [#allocation9], %s186
          %s189 = sshll.u32 %s2, 4
          %s190 = int_to_ptr.vmem [resolvable:$true] %s189
          %192 = dma.vmem_to_smem %s190, 16, [#allocation8], [#allocation9]
        $region20: #{tpu_custom_call.1} parent=11 // pred_fallthru
          _
        // Predicated region
        $region21: #{tpu_custom_call.1} parent=11 // pred_check
          %p193 = pneg %p109
        $region22: #{tpu_custom_call.1} parent=11 // pred_check_branch
          %195 = sbr.rel (%p193) target = $region24
        $region23: #{tpu_custom_call.1} parent=11 // pred_region
          %s197 = ssub.s32 16, 16
          %198 = vsyncadd [#allocation9], %s197
          %s200 = sshll.u32 %s3, 4
          %s201 = int_to_ptr.vmem [resolvable:$true] %s200
          %203 = dma.vmem_to_smem %s201, 16, [#allocation10], [#allocation9]
        $region24: #{tpu_custom_call.1} parent=11 // pred_fallthru
          _
        // Predicated region
        $region25: #{tpu_custom_call.1} parent=11 // pred_check
          %p204 = pneg %p130
        $region26: #{tpu_custom_call.1} parent=11 // pred_check_branch
          %206 = sbr.rel (%p204) target = $region28
        $region27: #{tpu_custom_call.1} parent=11 // pred_region
          %s208 = ssub.s32 16, 16
          %209 = vsyncadd [#allocation12], %s208
          %s211 = sshll.u32 %s4, 4
          %s212 = int_to_ptr.vmem [resolvable:$true] %s211
          %214 = dma.vmem_to_smem %s212, 16, [#allocation11], [#allocation12]
        $region28: #{tpu_custom_call.1} parent=11 // pred_fallthru
          _
      $region12: #{tpu_custom_call.1} parent=5 // pred_fallthru
        _
      %p215 = scmp.lt.s32.totalorder %s20, 2
      // Predicated region
      $region29: #{tpu_custom_call.1} parent=5 // pred_check
        %p216 = pneg %p215
      $region30: #{tpu_custom_call.1} parent=5 // pred_check_branch
        %218 = sbr.rel (%p216) target = $region32
      $region31: #{tpu_custom_call.1} parent=5 // pred_region
        // Predicated region
        $region33: #{tpu_custom_call.1} parent=31 // pred_check
          %p219 = pneg %p40
        $region34: #{tpu_custom_call.1} parent=31 // pred_check_branch
          %221 = sbr.rel (%p219) target = $region36
        $region35: #{tpu_custom_call.1} parent=31 // pred_region
          %s222 = sand.u32 %s30, 1
          %s223 = scalar_lea.sflag [#allocation4], %s222
          %s224 = sand.u32 %s30, 1
          %s225 = smul.addr %s224, 8
          %s226 = scalar_lea.vmem [#allocation3], %s225
          %s228 = ssub.s32 128, 128
          %229 = vsyncadd %s223, %s228
          %s230 = smul.addr %s20, 2
          %s231 = smul.addr %s230, 64
          %s232 = scalar_lea.hbm %s0, %s231
          %s234 = sshll.u32 %s226, 4
          %s235 = int_to_ptr.vmem [resolvable:$true] %s234
          %237 = dma.hbm_to_vmem [thread:$0]  %s232, 128, %s235, %s223
        $region36: #{tpu_custom_call.1} parent=31 // pred_fallthru
          _
      $region32: #{tpu_custom_call.1} parent=5 // pred_fallthru
        _
      %p238 = scmp.le.s32.totalorder 1, %s20
      %p239 = scmp.lt.s32.totalorder %s20, 3
      %p240 = pnand %p238, %p239
      %p241 = pneg %p240
      // Predicated region
      $region37: #{tpu_custom_call.1} parent=5 // pred_check
        _
      $region38: #{tpu_custom_call.1} parent=5 // pred_check_branch
        %243 = sbr.rel (%p240) target = $region40
      $region39: #{tpu_custom_call.1} parent=5 // pred_region
        %s244 = ssub.s32 %s20, 1
        %s245 = sand.u32 %s33, 1
        %s246 = scalar_lea.sflag [#allocation4], %s245
        %s247 = sand.u32 %s33, 1
        %s248 = smul.addr %s247, 8
        %s249 = scalar_lea.vmem [#allocation3], %s248
        // Predicated region
        $region41: #{tpu_custom_call.1} parent=39 // pred_check
          %p250 = pneg %p46
        $region42: #{tpu_custom_call.1} parent=39 // pred_check_branch
          %252 = sbr.rel (%p250) target = $region44
        $region43: #{tpu_custom_call.1} parent=39 // pred_region
          %253 = dma.done %s246, 128
        $region44: #{tpu_custom_call.1} parent=39 // pred_fallthru
          _
        // Predicated region
        $region45: #{tpu_custom_call.1} parent=39 // pred_check
          %p254 = pneg %p67
        $region46: #{tpu_custom_call.1} parent=39 // pred_check_branch
          %256 = sbr.rel (%p254) target = $region48
        $region47: #{tpu_custom_call.1} parent=39 // pred_region
          %257 = dma.done [#allocation6], 16
        $region48: #{tpu_custom_call.1} parent=39 // pred_fallthru
          _
        // Predicated region
        $region49: #{tpu_custom_call.1} parent=39 // pred_check
          %p258 = pneg %p88
        $region50: #{tpu_custom_call.1} parent=39 // pred_check_branch
          %260 = sbr.rel (%p258) target = $region52
        $region51: #{tpu_custom_call.1} parent=39 // pred_region
          %261 = dma.done [#allocation9], 16
        $region52: #{tpu_custom_call.1} parent=39 // pred_fallthru
          _
        // Predicated region
        $region53: #{tpu_custom_call.1} parent=39 // pred_check
          %p262 = pneg %p109
        $region54: #{tpu_custom_call.1} parent=39 // pred_check_branch
          %264 = sbr.rel (%p262) target = $region56
        $region55: #{tpu_custom_call.1} parent=39 // pred_region
          %265 = dma.done [#allocation9], 16
        $region56: #{tpu_custom_call.1} parent=39 // pred_fallthru
          _
        // Predicated region
        $region57: #{tpu_custom_call.1} parent=39 // pred_check
          %p266 = pneg %p130
        $region58: #{tpu_custom_call.1} parent=39 // pred_check_branch
          %268 = sbr.rel (%p266) target = $region60
        $region59: #{tpu_custom_call.1} parent=39 // pred_region
          %269 = dma.done [#allocation12], 16
        $region60: #{tpu_custom_call.1} parent=39 // pred_fallthru
          _
        %270 = sfence
        %s271 = sand.u32 %s33, 1
        %s272 = scalar_lea.sflag [#allocation4], %s271
        %s273 = sand.u32 %s33, 1
        %s274 = smul.addr %s273, 8
        %s275 = scalar_lea.vmem [#allocation3], %s274
        %p276 = pneg %p46
        %p277 = pneg %p43
        %p278 = pneg %p67
        %p279 = pneg %p64
        %p280 = pneg %p88
        %p281 = pneg %p85
        %p282 = pneg %p109
        %p283 = pneg %p106
        %p284 = pneg %p130
        %p285 = pneg %p127
        %p286 = pneg %p156
        %p287 = pneg %p153
        %s288 = sand.u32 %s143, 1
        %s289 = scalar_lea.sflag [#allocation5], %s288
        %s290 = sand.u32 %s143, 1
        %s291 = smul.addr %s290, 8
        %s292 = scalar_lea.vmem [#allocation13], %s291
        %293 = vst [vmem:[#allocation2] sm:$0x3] 0.0
        %294 = vst [vmem:[#allocation2 + $0x6] sm:$0x3] 0.0
        %v295 = vlaneseq
        %v296 = vand.u32 %v295, 127
        %v297 = vadd.s32 %v296, 128
        %vm298 = vcmp.lt.s32.totalorder %v296, 0
        %v299 = vsub.s32 0, %v296
        %v300 = vsel %vm298, %v299, %v296
        %v301 = vshrl.u32 %v300, 4
        %v302 = vand.u32 %v300, 15
        %v303 = vsub.s32 0, %v302
        %v304 = vsel %vm298, %v303, %v302
        %vm305 = vcmp.lt.s32.totalorder %v297, 0
        %v306 = vsub.s32 0, %v297
        %v307 = vsel %vm305, %v306, %v297
        %v308 = vshrl.u32 %v307, 4
        %v309 = vand.u32 %v307, 15
        %v310 = vsub.s32 0, %v309
        %v311 = vsel %vm305, %v310, %v309
        %vm312 = vcmp.ne.s32.totalorder %v304, 0
        %vm313 = vcmp.ne.s32.totalorder %v311, 0
        %vm314 = vcmp.lt.s32.totalorder %v304, 0
        %vm315 = vcmp.lt.s32.totalorder %v311, 0
        %vm316 = vmand %vm314, %vm312
        %vm317 = vmand %vm315, %vm313
        %v318 = vadd.s32 %v304, 16
        %v319 = vadd.s32 %v311, 16
        %v320 = vsel %vm316, %v318, %v304
        %v321 = vsel %vm317, %v319, %v311
        %vm322 = vcmp.ne.s32.totalorder %v320, 0
        %vm323 = vcmp.ne.s32.totalorder %v321, 0
        %v324 = vsel %vm322, 1, 0
        %v325 = vsel %vm323, 1, 0
        %v326 = vcvt.s32.f32 %v324
        %v327 = vcvt.s32.f32 %v325
        %vm328 = vcmp.ne.s32.totalorder %v320, 15
        %vm329 = vcmp.ne.s32.totalorder %v321, 15
        %v330 = vsel %vm328, 1, 0
        %v331 = vsel %vm329, 1, 0
        %v332 = vcvt.s32.f32 %v330
        %v333 = vcvt.s32.f32 %v331
        %v334 = vld [vmem:[%s249] sm:$0xff]
        %s335 = sld [smem:[#allocation7]]
        %v336 = vstv %s335
        %v337 = vmul.f32 %v336, %v334
        %v338 = vadd.f32 %v337, 0.0
        %s339 = sld [smem:[#allocation7 + $0x1]]
        %v340 = vstv %s339
        %v341 = vmul.f32 %v340, %v334
        %v343 = vrot.slane %v341, 5
        %v344 = vrot.slane %v343, 4
        %v346 = vadd.f32 %v338, %v344
        %s347 = sld [smem:[#allocation7 + $0x2]]
        %v348 = vstv %s347
        %v349 = vmul.f32 %v348, %v334
        %v351 = vrot.slane %v349, 6
        %v352 = vrot.slane %v351, 4
        %v354 = vadd.f32 %v346, %v352
        %s355 = sld [smem:[#allocation7 + $0x3]]
        %v356 = vstv %s355
        %v357 = vmul.f32 %v356, %v334
        %v359 = vrot.slane %v357, 7
        %v360 = vrot.slane %v359, 4
        %v362 = vadd.f32 %v354, %v360
        %s363 = sld [smem:[#allocation8]]
        %v364 = vstv %s363
        %v365 = vadd.f32 %v362, %v364
        %v366 = vxor.u32 %v365, 2147483648
        %v367 = vmul.f32 %v366, 1.442695
        %v368 = vpow.pop %v367
        %v369 = vadd.f32 %v368, 1.0
        %v370 = vrcp.pop %v369
        %v371 = vmul.f32 1.0, %v370
        %v372 = vmul.f32 %v365, %v371
        %v375 = vunpack.c.l.s4 1966171168
        %v376 = vunpack.c.0.s8 %v375
        %v377 = vlaneseq
        %v378 = vshrl.u32 %v377, 7
        %v379 = vsub.s32 %v376, %v378
        %v380 = vrot.slane %v372, %v379
        %v382 = vunpack.c.l.s4 1966171168
        %v383 = vunpack.c.0.s8 %v382
        %v384 = vlaneseq
        %v385 = vshrl.u32 %v384, 7
        %v386 = vsub.s32 %v383, %v385
        %v387 = vrot.slane %v380, %v386
        %v389 = vlaneseq
        %vm390 = vcmp.ge.s32.totalorder %v389, 0
        %vm391 = vcmp.lt.s32.totalorder %v389, 256
        %vm392 = vmand %vm390, %vm391
        %s393 = scalar_lea.vmem [#allocation2], 2
        %394 = vst.msk [vmem:[%s393] ss:$2 sm:$0x3] %vm392, %v387
        %s395 = sld [smem:[#allocation7 + $0x4]]
        %v396 = vstv %s395
        %v397 = vmul.f32 %v396, %v334
        %v398 = vadd.f32 %v397, 0.0
        %s399 = sld [smem:[#allocation7 + $0x5]]
        %v400 = vstv %s399
        %v401 = vmul.f32 %v400, %v334
        %v403 = vrot.slane %v401, 5
        %v404 = vrot.slane %v403, 4
        %v406 = vadd.f32 %v398, %v404
        %s407 = sld [smem:[#allocation7 + $0x6]]
        %v408 = vstv %s407
        %v409 = vmul.f32 %v408, %v334
        %v411 = vrot.slane %v409, 6
        %v412 = vrot.slane %v411, 4
        %v414 = vadd.f32 %v406, %v412
        %s415 = sld [smem:[#allocation7 + $0x7]]
        %v416 = vstv %s415
        %v417 = vmul.f32 %v416, %v334
        %v419 = vrot.slane %v417, 7
        %v420 = vrot.slane %v419, 4
        %v422 = vadd.f32 %v414, %v420
        %s423 = sld [smem:[#allocation8 + $0x1]]
        %v424 = vstv %s423
        %v425 = vadd.f32 %v422, %v424
        %v426 = vxor.u32 %v425, 2147483648
        %v427 = vmul.f32 %v426, 1.442695
        %v428 = vpow.pop %v427
        %v429 = vadd.f32 %v428, 1.0
        %v430 = vrcp.pop %v429
        %v431 = vmul.f32 1.0, %v430
        %v432 = vmul.f32 %v425, %v431
        %v435 = vunpack.c.l.s4 1966171168
        %v436 = vunpack.c.0.s8 %v435
        %v437 = vlaneseq
        %v438 = vshrl.u32 %v437, 7
        %v439 = vsub.s32 %v436, %v438
        %v440 = vrot.slane %v432, %v439
        %v442 = vunpack.c.l.s4 1966171168
        %v443 = vunpack.c.0.s8 %v442
        %v444 = vlaneseq
        %v445 = vshrl.u32 %v444, 7
        %v446 = vsub.s32 %v443, %v445
        %v447 = vrot.slane %v440, %v446
        %s449 = scalar_lea.vmem [#allocation2], 3
        %450 = vst.msk [vmem:[%s449] ss:$2 sm:$0x3] %vm392, %v447
        %v451 = vld [vmem:[#allocation2] ss:$2 sm:$0x7]
        %v454 = vcombine.low %v326, %v327
        %v456 = vunpack.c.l.s4 1966171168
        %v457 = vunpack.c.0.s8 %v456
        %v458 = vlaneseq
        %v459 = vshrl.u32 %v458, 7
        %v460 = vsub.s32 %v457, %v459
        %v461 = vrot.slane %v454, %v460
        %v463 = vunpack.c.l.s4 1966171168
        %v464 = vunpack.c.0.s8 %v463
        %v465 = vlaneseq
        %v466 = vshrl.u32 %v465, 7
        %v467 = vsub.s32 %v464, %v466
        %v468 = vrot.slane %v461, %v467
        %469 = vrot.lane.b32.xlu0 %v468, 111
        %v470 = vpop.permute.xlu0 %469
        %v471 = vrot.slane %v470, 7
        %vm472 = vcmask 908288
        %v473 = vsel %vm472, %v471, %v470
        %v475 = vmul.f32 %v451, %v473
        %s476 = sld [smem:[#allocation10]]
        %v477 = vstv %s476
        %v478 = vmul.f32 %v477, %v475
        %v479 = vadd.f32 %v478, 0.0
        %s480 = sld [smem:[#allocation10 + $0x2]]
        %v481 = vstv %s480
        %v482 = vmul.f32 %v481, %v475
        %v483 = vadd.f32 %v482, 0.0
        %s484 = sld [smem:[#allocation10 + $0x4]]
        %v485 = vstv %s484
        %v486 = vmul.f32 %v485, %v475
        %v487 = vadd.f32 %v486, 0.0
        %s488 = sld [smem:[#allocation10 + $0x6]]
        %v489 = vstv %s488
        %v490 = vmul.f32 %v489, %v475
        %v491 = vadd.f32 %v490, 0.0
        %s492 = scalar_lea.vmem [#allocation2], 1
        %v493 = vld [vmem:[%s492] ss:$2 sm:$0x7]
        %v494 = vmul.f32 %v493, %v473
        %s495 = sld [smem:[#allocation10 + $0x1]]
        %v496 = vstv %s495
        %v497 = vmul.f32 %v496, %v494
        %v498 = vadd.f32 %v479, %v497
        %s499 = sld [smem:[#allocation10 + $0x3]]
        %v500 = vstv %s499
        %v501 = vmul.f32 %v500, %v494
        %v502 = vadd.f32 %v483, %v501
        %s503 = sld [smem:[#allocation10 + $0x5]]
        %v504 = vstv %s503
        %v505 = vmul.f32 %v504, %v494
        %v506 = vadd.f32 %v487, %v505
        %s507 = sld [smem:[#allocation10 + $0x7]]
        %v508 = vstv %s507
        %v509 = vmul.f32 %v508, %v494
        %v510 = vadd.f32 %v491, %v509
        %v511 = vld [vmem:[#allocation2] ss:$2 sm:$0x7]
        %s512 = sld [smem:[#allocation10 + $0x8]]
        %v513 = vstv %s512
        %v514 = vmul.f32 %v513, %v511
        %516 = vrot.lane.b32.xlu0 %v514, 127
        %v517 = vpop.permute.xlu0 %516
        %v518 = vrot.slane %v517, 1
        %vm519 = vcmask 1039360
        %v520 = vsel %vm519, %v517, %v518
        %v522 = vadd.f32 %v498, %v520
        %s523 = sld [smem:[#allocation10 + $0xa]]
        %v524 = vstv %s523
        %v525 = vmul.f32 %v524, %v511
        %527 = vrot.lane.b32.xlu0 %v525, 127
        %v528 = vpop.permute.xlu0 %527
        %v529 = vrot.slane %v528, 1
        %v530 = vsel %vm519, %v528, %v529
        %v532 = vadd.f32 %v502, %v530
        %s533 = sld [smem:[#allocation10 + $0xc]]
        %v534 = vstv %s533
        %v535 = vmul.f32 %v534, %v511
        %537 = vrot.lane.b32.xlu0 %v535, 127
        %v538 = vpop.permute.xlu0 %537
        %v539 = vrot.slane %v538, 1
        %v540 = vsel %vm519, %v538, %v539
        %v542 = vadd.f32 %v506, %v540
        %s543 = sld [smem:[#allocation10 + $0xe]]
        %v544 = vstv %s543
        %v545 = vmul.f32 %v544, %v511
        %547 = vrot.lane.b32.xlu0 %v545, 127
        %v548 = vpop.permute.xlu0 %547
        %v549 = vrot.slane %v548, 1
        %v550 = vsel %vm519, %v548, %v549
        %v552 = vadd.f32 %v510, %v550
        %v553 = vld [vmem:[%s492] ss:$2 sm:$0x7]
        %s554 = sld [smem:[#allocation10 + $0x9]]
        %v555 = vstv %s554
        %v556 = vmul.f32 %v555, %v553
        %558 = vrot.lane.b32.xlu0 %v556, 127
        %v559 = vpop.permute.xlu0 %558
        %v560 = vrot.slane %v559, 1
        %v561 = vsel %vm519, %v559, %v560
        %v563 = vadd.f32 %v522, %v561
        %s564 = sld [smem:[#allocation10 + $0xb]]
        %v565 = vstv %s564
        %v566 = vmul.f32 %v565, %v553
        %568 = vrot.lane.b32.xlu0 %v566, 127
        %v569 = vpop.permute.xlu0 %568
        %v570 = vrot.slane %v569, 1
        %v571 = vsel %vm519, %v569, %v570
        %v573 = vadd.f32 %v532, %v571
        %s574 = sld [smem:[#allocation10 + $0xd]]
        %v575 = vstv %s574
        %v576 = vmul.f32 %v575, %v553
        %578 = vrot.lane.b32.xlu0 %v576, 127
        %v579 = vpop.permute.xlu0 %578
        %v580 = vrot.slane %v579, 1
        %v581 = vsel %vm519, %v579, %v580
        %v583 = vadd.f32 %v542, %v581
        %s584 = sld [smem:[#allocation10 + $0xf]]
        %v585 = vstv %s584
        %v586 = vmul.f32 %v585, %v553
        %588 = vrot.lane.b32.xlu0 %v586, 127
        %v589 = vpop.permute.xlu0 %588
        %v590 = vrot.slane %v589, 1
        %v591 = vsel %vm519, %v589, %v590
        %v593 = vadd.f32 %v552, %v591
        %v596 = vcombine.low %v332, %v333
        %v598 = vunpack.c.l.s4 1966171168
        %v599 = vunpack.c.0.s8 %v598
        %v600 = vlaneseq
        %v601 = vshrl.u32 %v600, 7
        %v602 = vsub.s32 %v599, %v601
        %v603 = vrot.slane %v596, %v602
        %v605 = vunpack.c.l.s4 1966171168
        %v606 = vunpack.c.0.s8 %v605
        %v607 = vlaneseq
        %v608 = vshrl.u32 %v607, 7
        %v609 = vsub.s32 %v606, %v608
        %v610 = vrot.slane %v603, %v609
        %611 = vrot.lane.b32.xlu0 %v610, 113
        %v612 = vpop.permute.xlu0 %611
        %v613 = vrot.slane %v612, 7
        %vm614 = vcmask 924672
        %v615 = vsel %vm614, %v613, %v612
        %v617 = vmul.f32 %v511, %v615
        %s618 = sld [smem:[#allocation10 + $0x10]]
        %v619 = vstv %s618
        %v620 = vmul.f32 %v619, %v617
        %622 = vrot.lane.b32.xlu0 %v620, 126
        %v623 = vpop.permute.xlu0 %622
        %v624 = vrot.slane %v623, 1
        %vm625 = vcmask 1031168
        %v626 = vsel %vm625, %v623, %v624
        %v628 = vadd.f32 %v563, %v626
        %s629 = sld [smem:[#allocation10 + $0x12]]
        %v630 = vstv %s629
        %v631 = vmul.f32 %v630, %v617
        %633 = vrot.lane.b32.xlu0 %v631, 126
        %v634 = vpop.permute.xlu0 %633
        %v635 = vrot.slane %v634, 1
        %v636 = vsel %vm625, %v634, %v635
        %v638 = vadd.f32 %v573, %v636
        %s639 = sld [smem:[#allocation10 + $0x14]]
        %v640 = vstv %s639
        %v641 = vmul.f32 %v640, %v617
        %643 = vrot.lane.b32.xlu0 %v641, 126
        %v644 = vpop.permute.xlu0 %643
        %v645 = vrot.slane %v644, 1
        %v646 = vsel %vm625, %v644, %v645
        %v648 = vadd.f32 %v583, %v646
        %s649 = sld [smem:[#allocation10 + $0x16]]
        %v650 = vstv %s649
        %v651 = vmul.f32 %v650, %v617
        %653 = vrot.lane.b32.xlu0 %v651, 126
        %v654 = vpop.permute.xlu0 %653
        %v655 = vrot.slane %v654, 1
        %v656 = vsel %vm625, %v654, %v655
        %v658 = vadd.f32 %v593, %v656
        %v659 = vld [vmem:[%s492] ss:$2 sm:$0x7]
        %v660 = vmul.f32 %v659, %v615
        %s661 = sld [smem:[#allocation10 + $0x11]]
        %v662 = vstv %s661
        %v663 = vmul.f32 %v662, %v660
        %665 = vrot.lane.b32.xlu0 %v663, 126
        %v666 = vpop.permute.xlu0 %665
        %v667 = vrot.slane %v666, 1
        %v668 = vsel %vm625, %v666, %v667
        %v670 = vadd.f32 %v628, %v668
        %s671 = sld [smem:[#allocation10 + $0x13]]
        %v672 = vstv %s671
        %v673 = vmul.f32 %v672, %v660
        %675 = vrot.lane.b32.xlu0 %v673, 126
        %v676 = vpop.permute.xlu0 %675
        %v677 = vrot.slane %v676, 1
        %v678 = vsel %vm625, %v676, %v677
        %v680 = vadd.f32 %v638, %v678
        %s681 = sld [smem:[#allocation10 + $0x15]]
        %v682 = vstv %s681
        %v683 = vmul.f32 %v682, %v660
        %685 = vrot.lane.b32.xlu0 %v683, 126
        %v686 = vpop.permute.xlu0 %685
        %v687 = vrot.slane %v686, 1
        %v688 = vsel %vm625, %v686, %v687
        %v690 = vadd.f32 %v648, %v688
        %s691 = sld [smem:[#allocation10 + $0x17]]
        %v692 = vstv %s691
        %v693 = vmul.f32 %v692, %v660
        %695 = vrot.lane.b32.xlu0 %v693, 126
        %v696 = vpop.permute.xlu0 %695
        %v697 = vrot.slane %v696, 1
        %v698 = vsel %vm625, %v696, %v697
        %v700 = vadd.f32 %v658, %v698
        %v701 = vld [vmem:[#allocation2] ss:$2 sm:$0x7]
        %702 = vrot.lane.b32.xlu0 %v468, 127
        %v703 = vpop.permute.xlu0 %702
        %v704 = vrot.slane %v703, 7
        %v705 = vsel %vm519, %v704, %v703
        %v707 = vmul.f32 %v701, %v705
        %s708 = sld [smem:[#allocation10 + $0x18]]
        %v709 = vstv %s708
        %v710 = vmul.f32 %v709, %v707
        %712 = vrot.lane.b32.xlu0 %v710, 112
        %v713 = vpop.permute.xlu0 %712
        %v714 = vrot.slane %v713, 1
        %vm715 = vcmask 916480
        %v716 = vsel %vm715, %v713, %v714
        %v718 = vadd.f32 %v670, %v716
        %s719 = sld [smem:[#allocation10 + $0x1a]]
        %v720 = vstv %s719
        %v721 = vmul.f32 %v720, %v707
        %723 = vrot.lane.b32.xlu0 %v721, 112
        %v724 = vpop.permute.xlu0 %723
        %v725 = vrot.slane %v724, 1
        %v726 = vsel %vm715, %v724, %v725
        %v728 = vadd.f32 %v680, %v726
        %s729 = sld [smem:[#allocation10 + $0x1c]]
        %v730 = vstv %s729
        %v731 = vmul.f32 %v730, %v707
        %733 = vrot.lane.b32.xlu0 %v731, 112
        %v734 = vpop.permute.xlu0 %733
        %v735 = vrot.slane %v734, 1
        %v736 = vsel %vm715, %v734, %v735
        %v738 = vadd.f32 %v690, %v736
        %s739 = sld [smem:[#allocation10 + $0x1e]]
        %v740 = vstv %s739
        %v741 = vmul.f32 %v740, %v707
        %743 = vrot.lane.b32.xlu0 %v741, 112
        %v744 = vpop.permute.xlu0 %743
        %v745 = vrot.slane %v744, 1
        %v746 = vsel %vm715, %v744, %v745
        %v748 = vadd.f32 %v700, %v746
        %v749 = vld [vmem:[%s492] ss:$2 sm:$0x7]
        %v750 = vmul.f32 %v749, %v705
        %s751 = sld [smem:[#allocation10 + $0x19]]
        %v752 = vstv %s751
        %v753 = vmul.f32 %v752, %v750
        %755 = vrot.lane.b32.xlu0 %v753, 112
        %v756 = vpop.permute.xlu0 %755
        %v757 = vrot.slane %v756, 1
        %v758 = vsel %vm715, %v756, %v757
        %v760 = vadd.f32 %v718, %v758
        %s761 = sld [smem:[#allocation10 + $0x1b]]
        %v762 = vstv %s761
        %v763 = vmul.f32 %v762, %v750
        %765 = vrot.lane.b32.xlu0 %v763, 112
        %v766 = vpop.permute.xlu0 %765
        %v767 = vrot.slane %v766, 1
        %v768 = vsel %vm715, %v766, %v767
        %v770 = vadd.f32 %v728, %v768
        %s771 = sld [smem:[#allocation10 + $0x1d]]
        %v772 = vstv %s771
        %v773 = vmul.f32 %v772, %v750
        %775 = vrot.lane.b32.xlu0 %v773, 112
        %v776 = vpop.permute.xlu0 %775
        %v777 = vrot.slane %v776, 1
        %v778 = vsel %vm715, %v776, %v777
        %v780 = vadd.f32 %v738, %v778
        %s781 = sld [smem:[#allocation10 + $0x1f]]
        %v782 = vstv %s781
        %v783 = vmul.f32 %v782, %v750
        %785 = vrot.lane.b32.xlu0 %v783, 112
        %v786 = vpop.permute.xlu0 %785
        %v787 = vrot.slane %v786, 1
        %v788 = vsel %vm715, %v786, %v787
        %v790 = vadd.f32 %v748, %v788
        %v791 = vld [vmem:[%s393] ss:$2 sm:$0x3]
        %s792 = sld [smem:[#allocation10 + $0x20]]
        %v793 = vstv %s792
        %v794 = vmul.f32 %v793, %v791
        %796 = vrot.lane.b32.xlu0 %v794, 111
        %v797 = vpop.permute.xlu0 %796
        %v798 = vrot.slane %v797, 7
        %v799 = vsel %vm472, %v798, %v797
        %v801 = vadd.f32 %v760, %v799
        %s802 = sld [smem:[#allocation10 + $0x22]]
        %v803 = vstv %s802
        %v804 = vmul.f32 %v803, %v791
        %806 = vrot.lane.b32.xlu0 %v804, 111
        %v807 = vpop.permute.xlu0 %806
        %v808 = vrot.slane %v807, 7
        %v809 = vsel %vm472, %v808, %v807
        %v811 = vadd.f32 %v770, %v809
        %s812 = sld [smem:[#allocation10 + $0x24]]
        %v813 = vstv %s812
        %v814 = vmul.f32 %v813, %v791
        %816 = vrot.lane.b32.xlu0 %v814, 111
        %v817 = vpop.permute.xlu0 %816
        %v818 = vrot.slane %v817, 7
        %v819 = vsel %vm472, %v818, %v817
        %v821 = vadd.f32 %v780, %v819
        %s822 = sld [smem:[#allocation10 + $0x26]]
        %v823 = vstv %s822
        %v824 = vmul.f32 %v823, %v791
        %826 = vrot.lane.b32.xlu0 %v824, 111
        %v827 = vpop.permute.xlu0 %826
        %v828 = vrot.slane %v827, 7
        %v829 = vsel %vm472, %v828, %v827
        %v831 = vadd.f32 %v790, %v829
        %v832 = vld [vmem:[%s449] ss:$2 sm:$0x3]
        %s833 = sld [smem:[#allocation10 + $0x21]]
        %v834 = vstv %s833
        %v835 = vmul.f32 %v834, %v832
        %837 = vrot.lane.b32.xlu0 %v835, 111
        %v838 = vpop.permute.xlu0 %837
        %v839 = vrot.slane %v838, 7
        %v840 = vsel %vm472, %v839, %v838
        %v842 = vadd.f32 %v801, %v840
        %s843 = sld [smem:[#allocation10 + $0x23]]
        %v844 = vstv %s843
        %v845 = vmul.f32 %v844, %v832
        %847 = vrot.lane.b32.xlu0 %v845, 111
        %v848 = vpop.permute.xlu0 %847
        %v849 = vrot.slane %v848, 7
        %v850 = vsel %vm472, %v849, %v848
        %v852 = vadd.f32 %v811, %v850
        %s853 = sld [smem:[#allocation10 + $0x25]]
        %v854 = vstv %s853
        %v855 = vmul.f32 %v854, %v832
        %857 = vrot.lane.b32.xlu0 %v855, 111
        %v858 = vpop.permute.xlu0 %857
        %v859 = vrot.slane %v858, 7
        %v860 = vsel %vm472, %v859, %v858
        %v862 = vadd.f32 %v821, %v860
        %s863 = sld [smem:[#allocation10 + $0x27]]
        %v864 = vstv %s863
        %v865 = vmul.f32 %v864, %v832
        %867 = vrot.lane.b32.xlu0 %v865, 111
        %v868 = vpop.permute.xlu0 %867
        %v869 = vrot.slane %v868, 7
        %v870 = vsel %vm472, %v869, %v868
        %v872 = vadd.f32 %v831, %v870
        %s873 = scalar_lea.vmem [#allocation2], 2
        %v874 = vld [vmem:[%s873] ss:$2 sm:$0x7]
        %875 = vrot.lane.b32.xlu0 %v610, 1
        %v876 = vpop.permute.xlu0 %875
        %v877 = vrot.slane %v876, 7
        %vm878 = vcmask 7168
        %v879 = vsel %vm878, %v877, %v876
        %v881 = vmul.f32 %v874, %v879
        %s882 = sld [smem:[#allocation10 + $0x28]]
        %v883 = vstv %s882
        %v884 = vmul.f32 %v883, %v881
        %886 = vrot.lane.b32.xlu0 %v884, 110
        %v887 = vpop.permute.xlu0 %886
        %v888 = vrot.slane %v887, 7
        %vm889 = vcmask 900096
        %v890 = vsel %vm889, %v888, %v887
        %v892 = vadd.f32 %v842, %v890
        %s893 = sld [smem:[#allocation10 + $0x2a]]
        %v894 = vstv %s893
        %v895 = vmul.f32 %v894, %v881
        %897 = vrot.lane.b32.xlu0 %v895, 110
        %v898 = vpop.permute.xlu0 %897
        %v899 = vrot.slane %v898, 7
        %v900 = vsel %vm889, %v899, %v898
        %v902 = vadd.f32 %v852, %v900
        %s903 = sld [smem:[#allocation10 + $0x2c]]
        %v904 = vstv %s903
        %v905 = vmul.f32 %v904, %v881
        %907 = vrot.lane.b32.xlu0 %v905, 110
        %v908 = vpop.permute.xlu0 %907
        %v909 = vrot.slane %v908, 7
        %v910 = vsel %vm889, %v909, %v908
        %v912 = vadd.f32 %v862, %v910
        %s913 = sld [smem:[#allocation10 + $0x2e]]
        %v914 = vstv %s913
        %v915 = vmul.f32 %v914, %v881
        %917 = vrot.lane.b32.xlu0 %v915, 110
        %v918 = vpop.permute.xlu0 %917
        %v919 = vrot.slane %v918, 7
        %v920 = vsel %vm889, %v919, %v918
        %v922 = vadd.f32 %v872, %v920
        %s923 = scalar_lea.vmem [#allocation2], 3
        %v924 = vld [vmem:[%s923] ss:$2 sm:$0x7]
        %v925 = vmul.f32 %v924, %v879
        %s926 = sld [smem:[#allocation10 + $0x29]]
        %v927 = vstv %s926
        %v928 = vmul.f32 %v927, %v925
        %930 = vrot.lane.b32.xlu0 %v928, 110
        %v931 = vpop.permute.xlu0 %930
        %v932 = vrot.slane %v931, 7
        %v933 = vsel %vm889, %v932, %v931
        %v935 = vadd.f32 %v892, %v933
        %s936 = sld [smem:[#allocation10 + $0x2b]]
        %v937 = vstv %s936
        %v938 = vmul.f32 %v937, %v925
        %940 = vrot.lane.b32.xlu0 %v938, 110
        %v941 = vpop.permute.xlu0 %940
        %v942 = vrot.slane %v941, 7
        %v943 = vsel %vm889, %v942, %v941
        %v945 = vadd.f32 %v902, %v943
        %s946 = sld [smem:[#allocation10 + $0x2d]]
        %v947 = vstv %s946
        %v948 = vmul.f32 %v947, %v925
        %950 = vrot.lane.b32.xlu0 %v948, 110
        %v951 = vpop.permute.xlu0 %950
        %v952 = vrot.slane %v951, 7
        %v953 = vsel %vm889, %v952, %v951
        %v955 = vadd.f32 %v912, %v953
        %s956 = sld [smem:[#allocation10 + $0x2f]]
        %v957 = vstv %s956
        %v958 = vmul.f32 %v957, %v925
        %960 = vrot.lane.b32.xlu0 %v958, 110
        %v961 = vpop.permute.xlu0 %960
        %v962 = vrot.slane %v961, 7
        %v963 = vsel %vm889, %v962, %v961
        %v965 = vadd.f32 %v922, %v963
        %v966 = vld [vmem:[%s873] ss:$2 sm:$0x7]
        %967 = vrot.lane.b32.xlu0 %v468, 15
        %v968 = vpop.permute.xlu0 %967
        %v969 = vrot.slane %v968, 7
        %vm970 = vcmask 121856
        %v971 = vsel %vm970, %v969, %v968
        %v973 = vmul.f32 %v966, %v971
        %s974 = sld [smem:[#allocation10 + $0x30]]
        %v975 = vstv %s974
        %v976 = vmul.f32 %v975, %v973
        %978 = vrot.lane.b32.xlu0 %v976, 96
        %v979 = vpop.permute.xlu0 %978
        %v980 = vrot.slane %v979, 7
        %vm981 = vcmask 785408
        %v982 = vsel %vm981, %v980, %v979
        %v984 = vadd.f32 %v935, %v982
        %s985 = sld [smem:[#allocation10 + $0x32]]
        %v986 = vstv %s985
        %v987 = vmul.f32 %v986, %v973
        %989 = vrot.lane.b32.xlu0 %v987, 96
        %v990 = vpop.permute.xlu0 %989
        %v991 = vrot.slane %v990, 7
        %v992 = vsel %vm981, %v991, %v990
        %v994 = vadd.f32 %v945, %v992
        %s995 = sld [smem:[#allocation10 + $0x34]]
        %v996 = vstv %s995
        %v997 = vmul.f32 %v996, %v973
        %999 = vrot.lane.b32.xlu0 %v997, 96
        %v1000 = vpop.permute.xlu0 %999
        %v1001 = vrot.slane %v1000, 7
        %v1002 = vsel %vm981, %v1001, %v1000
        %v1004 = vadd.f32 %v955, %v1002
        %s1005 = sld [smem:[#allocation10 + $0x36]]
        %v1006 = vstv %s1005
        %v1007 = vmul.f32 %v1006, %v973
        %1009 = vrot.lane.b32.xlu0 %v1007, 96
        %v1010 = vpop.permute.xlu0 %1009
        %v1011 = vrot.slane %v1010, 7
        %v1012 = vsel %vm981, %v1011, %v1010
        %v1014 = vadd.f32 %v965, %v1012
        %v1015 = vld [vmem:[%s923] ss:$2 sm:$0x7]
        %v1016 = vmul.f32 %v1015, %v971
        %s1017 = sld [smem:[#allocation10 + $0x31]]
        %v1018 = vstv %s1017
        %v1019 = vmul.f32 %v1018, %v1016
        %1021 = vrot.lane.b32.xlu0 %v1019, 96
        %v1022 = vpop.permute.xlu0 %1021
        %v1023 = vrot.slane %v1022, 7
        %v1024 = vsel %vm981, %v1023, %v1022
        %v1026 = vadd.f32 %v984, %v1024
        %s1027 = sld [smem:[#allocation10 + $0x33]]
        %v1028 = vstv %s1027
        %v1029 = vmul.f32 %v1028, %v1016
        %1031 = vrot.lane.b32.xlu0 %v1029, 96
        %v1032 = vpop.permute.xlu0 %1031
        %v1033 = vrot.slane %v1032, 7
        %v1034 = vsel %vm981, %v1033, %v1032
        %v1036 = vadd.f32 %v994, %v1034
        %s1037 = sld [smem:[#allocation10 + $0x35]]
        %v1038 = vstv %s1037
        %v1039 = vmul.f32 %v1038, %v1016
        %1041 = vrot.lane.b32.xlu0 %v1039, 96
        %v1042 = vpop.permute.xlu0 %1041
        %v1043 = vrot.slane %v1042, 7
        %v1044 = vsel %vm981, %v1043, %v1042
        %v1046 = vadd.f32 %v1004, %v1044
        %s1047 = sld [smem:[#allocation10 + $0x37]]
        %v1048 = vstv %s1047
        %v1049 = vmul.f32 %v1048, %v1016
        %1051 = vrot.lane.b32.xlu0 %v1049, 96
        %v1052 = vpop.permute.xlu0 %1051
        %v1053 = vrot.slane %v1052, 7
        %v1054 = vsel %vm981, %v1053, %v1052
        %v1056 = vadd.f32 %v1014, %v1054
        %v1057 = vld [vmem:[%s873] ss:$2 sm:$0x7]
        %s1058 = sld [smem:[#allocation10 + $0x38]]
        %v1059 = vstv %s1058
        %v1060 = vmul.f32 %v1059, %v1057
        %1062 = vrot.lane.b32.xlu0 %v1060, 95
        %v1063 = vpop.permute.xlu0 %1062
        %v1064 = vrot.slane %v1063, 7
        %vm1065 = vcmask 777216
        %v1066 = vsel %vm1065, %v1064, %v1063
        %v1068 = vadd.f32 %v1026, %v1066
        %s1069 = sld [smem:[#allocation10 + $0x3a]]
        %v1070 = vstv %s1069
        %v1071 = vmul.f32 %v1070, %v1057
        %1073 = vrot.lane.b32.xlu0 %v1071, 95
        %v1074 = vpop.permute.xlu0 %1073
        %v1075 = vrot.slane %v1074, 7
        %v1076 = vsel %vm1065, %v1075, %v1074
        %v1078 = vadd.f32 %v1036, %v1076
        %s1079 = sld [smem:[#allocation10 + $0x3c]]
        %v1080 = vstv %s1079
        %v1081 = vmul.f32 %v1080, %v1057
        %1083 = vrot.lane.b32.xlu0 %v1081, 95
        %v1084 = vpop.permute.xlu0 %1083
        %v1085 = vrot.slane %v1084, 7
        %v1086 = vsel %vm1065, %v1085, %v1084
        %v1088 = vadd.f32 %v1046, %v1086
        %s1089 = sld [smem:[#allocation10 + $0x3e]]
        %v1090 = vstv %s1089
        %v1091 = vmul.f32 %v1090, %v1057
        %1093 = vrot.lane.b32.xlu0 %v1091, 95
        %v1094 = vpop.permute.xlu0 %1093
        %v1095 = vrot.slane %v1094, 7
        %v1096 = vsel %vm1065, %v1095, %v1094
        %v1098 = vadd.f32 %v1056, %v1096
        %v1099 = vld [vmem:[%s923] ss:$2 sm:$0x7]
        %s1100 = sld [smem:[#allocation10 + $0x39]]
        %v1101 = vstv %s1100
        %v1102 = vmul.f32 %v1101, %v1099
        %1104 = vrot.lane.b32.xlu0 %v1102, 95
        %v1105 = vpop.permute.xlu0 %1104
        %v1106 = vrot.slane %v1105, 7
        %v1107 = vsel %vm1065, %v1106, %v1105
        %v1109 = vadd.f32 %v1068, %v1107
        %s1110 = sld [smem:[#allocation10 + $0x3b]]
        %v1111 = vstv %s1110
        %v1112 = vmul.f32 %v1111, %v1099
        %1114 = vrot.lane.b32.xlu0 %v1112, 95
        %v1115 = vpop.permute.xlu0 %1114
        %v1116 = vrot.slane %v1115, 7
        %v1117 = vsel %vm1065, %v1116, %v1115
        %v1119 = vadd.f32 %v1078, %v1117
        %s1120 = sld [smem:[#allocation10 + $0x3d]]
        %v1121 = vstv %s1120
        %v1122 = vmul.f32 %v1121, %v1099
        %1124 = vrot.lane.b32.xlu0 %v1122, 95
        %v1125 = vpop.permute.xlu0 %1124
        %v1126 = vrot.slane %v1125, 7
        %v1127 = vsel %vm1065, %v1126, %v1125
        %v1129 = vadd.f32 %v1088, %v1127
        %s1130 = sld [smem:[#allocation10 + $0x3f]]
        %v1131 = vstv %s1130
        %v1132 = vmul.f32 %v1131, %v1099
        %1134 = vrot.lane.b32.xlu0 %v1132, 95
        %v1135 = vpop.permute.xlu0 %1134
        %v1136 = vrot.slane %v1135, 7
        %v1137 = vsel %vm1065, %v1136, %v1135
        %v1139 = vadd.f32 %v1098, %v1137
        %1140 = vrot.lane.b32.xlu0 %v610, 17
        %v1141 = vpop.permute.xlu0 %1140
        %v1142 = vrot.slane %v1141, 7
        %vm1143 = vcmask 138240
        %v1144 = vsel %vm1143, %v1142, %v1141
        %v1146 = vmul.f32 %v1057, %v1144
        %s1147 = sld [smem:[#allocation10 + $0x40]]
        %v1148 = vstv %s1147
        %v1149 = vmul.f32 %v1148, %v1146
        %1151 = vrot.lane.b32.xlu0 %v1149, 94
        %v1152 = vpop.permute.xlu0 %1151
        %v1153 = vrot.slane %v1152, 7
        %vm1154 = vcmask 769024
        %v1155 = vsel %vm1154, %v1153, %v1152
        %v1157 = vadd.f32 %v1109, %v1155
        %s1158 = sld [smem:[#allocation10 + $0x42]]
        %v1159 = vstv %s1158
        %v1160 = vmul.f32 %v1159, %v1146
        %1162 = vrot.lane.b32.xlu0 %v1160, 94
        %v1163 = vpop.permute.xlu0 %1162
        %v1164 = vrot.slane %v1163, 7
        %v1165 = vsel %vm1154, %v1164, %v1163
        %v1167 = vadd.f32 %v1119, %v1165
        %s1168 = sld [smem:[#allocation10 + $0x44]]
        %v1169 = vstv %s1168
        %v1170 = vmul.f32 %v1169, %v1146
        %1172 = vrot.lane.b32.xlu0 %v1170, 94
        %v1173 = vpop.permute.xlu0 %1172
        %v1174 = vrot.slane %v1173, 7
        %v1175 = vsel %vm1154, %v1174, %v1173
        %v1177 = vadd.f32 %v1129, %v1175
        %s1178 = sld [smem:[#allocation10 + $0x46]]
        %v1179 = vstv %s1178
        %v1180 = vmul.f32 %v1179, %v1146
        %1182 = vrot.lane.b32.xlu0 %v1180, 94
        %v1183 = vpop.permute.xlu0 %1182
        %v1184 = vrot.slane %v1183, 7
        %v1185 = vsel %vm1154, %v1184, %v1183
        %v1187 = vadd.f32 %v1139, %v1185
        %v1188 = vld [vmem:[%s923] ss:$2 sm:$0x7]
        %v1189 = vmul.f32 %v1188, %v1144
        %s1190 = sld [smem:[#allocation10 + $0x41]]
        %v1191 = vstv %s1190
        %v1192 = vmul.f32 %v1191, %v1189
        %1194 = vrot.lane.b32.xlu0 %v1192, 94
        %v1195 = vpop.permute.xlu0 %1194
        %v1196 = vrot.slane %v1195, 7
        %v1197 = vsel %vm1154, %v1196, %v1195
        %v1199 = vadd.f32 %v1157, %v1197
        %s1200 = sld [smem:[#allocation10 + $0x43]]
        %v1201 = vstv %s1200
        %v1202 = vmul.f32 %v1201, %v1189
        %1204 = vrot.lane.b32.xlu0 %v1202, 94
        %v1205 = vpop.permute.xlu0 %1204
        %v1206 = vrot.slane %v1205, 7
        %v1207 = vsel %vm1154, %v1206, %v1205
        %v1209 = vadd.f32 %v1167, %v1207
        %s1210 = sld [smem:[#allocation10 + $0x45]]
        %v1211 = vstv %s1210
        %v1212 = vmul.f32 %v1211, %v1189
        %1214 = vrot.lane.b32.xlu0 %v1212, 94
        %v1215 = vpop.permute.xlu0 %1214
        %v1216 = vrot.slane %v1215, 7
        %v1217 = vsel %vm1154, %v1216, %v1215
        %v1219 = vadd.f32 %v1177, %v1217
        %s1220 = sld [smem:[#allocation10 + $0x47]]
        %v1221 = vstv %s1220
        %v1222 = vmul.f32 %v1221, %v1189
        %1224 = vrot.lane.b32.xlu0 %v1222, 94
        %v1225 = vpop.permute.xlu0 %1224
        %v1226 = vrot.slane %v1225, 7
        %v1227 = vsel %vm1154, %v1226, %v1225
        %v1229 = vadd.f32 %v1187, %v1227
        %s1230 = sld [smem:[#allocation11]]
        %v1231 = vstv %s1230
        %v1232 = vadd.f32 %v1199, %v1231
        %v1233 = vxor.u32 %v1232, 2147483648
        %v1234 = vmul.f32 %v1233, 1.442695
        %v1235 = vpow.pop %v1234
        %v1236 = vadd.f32 %v1235, 1.0
        %v1237 = vrcp.pop %v1236
        %v1238 = vmul.f32 1.0, %v1237
        %v1239 = vmul.f32 %v1232, %v1238
        %v1242 = vunpack.c.l.s4 1966171168
        %v1243 = vunpack.c.0.s8 %v1242
        %v1244 = vlaneseq
        %v1245 = vshrl.u32 %v1244, 7
        %v1246 = vsub.s32 %v1243, %v1245
        %v1247 = vrot.slane %v334, %v1246
        %v1249 = vunpack.c.l.s4 1966171168
        %v1250 = vunpack.c.0.s8 %v1249
        %v1251 = vlaneseq
        %v1252 = vshrl.u32 %v1251, 7
        %v1253 = vsub.s32 %v1250, %v1252
        %v1254 = vrot.slane %v1247, %v1253
        %1255 = vrot.lane.b32.xlu0 %v1254, 111
        %v1256 = vpop.permute.xlu0 %1255
        %v1257 = vrot.slane %v1256, 7
        %v1258 = vsel %vm472, %v1257, %v1256
        %v1260 = vadd.f32 %v1239, %v1258
        %s1261 = sld [smem:[#allocation11 + $0x1]]
        %v1262 = vstv %s1261
        %v1263 = vadd.f32 %v1209, %v1262
        %v1264 = vxor.u32 %v1263, 2147483648
        %v1265 = vmul.f32 %v1264, 1.442695
        %v1266 = vpow.pop %v1265
        %v1267 = vadd.f32 %v1266, 1.0
        %v1268 = vrcp.pop %v1267
        %v1269 = vmul.f32 1.0, %v1268
        %v1270 = vmul.f32 %v1263, %v1269
        %v1271 = vcombine.high %v1247, %v1247
        %v1273 = vunpack.c.l.s4 1966171168
        %v1274 = vunpack.c.0.s8 %v1273
        %v1275 = vlaneseq
        %v1276 = vshrl.u32 %v1275, 7
        %v1277 = vsub.s32 %v1274, %v1276
        %v1278 = vrot.slane %v1271, %v1277
        %1279 = vrot.lane.b32.xlu0 %v1278, 111
        %v1280 = vpop.permute.xlu0 %1279
        %v1281 = vrot.slane %v1280, 7
        %v1282 = vsel %vm472, %v1281, %v1280
        %v1284 = vadd.f32 %v1270, %v1282
        %s1285 = sld [smem:[#allocation11 + $0x2]]
        %v1286 = vstv %s1285
        %v1287 = vadd.f32 %v1219, %v1286
        %v1288 = vxor.u32 %v1287, 2147483648
        %v1289 = vmul.f32 %v1288, 1.442695
        %v1290 = vpow.pop %v1289
        %v1291 = vadd.f32 %v1290, 1.0
        %v1292 = vrcp.pop %v1291
        %v1293 = vmul.f32 1.0, %v1292
        %v1294 = vmul.f32 %v1287, %v1293
        %v1295 = vcombine.high %v1254, %v1254
        %1296 = vrot.lane.b32.xlu0 %v1295, 111
        %v1297 = vpop.permute.xlu0 %1296
        %v1298 = vrot.slane %v1297, 7
        %v1299 = vsel %vm472, %v1298, %v1297
        %v1301 = vadd.f32 %v1294, %v1299
        %s1302 = sld [smem:[#allocation11 + $0x3]]
        %v1303 = vstv %s1302
        %v1304 = vadd.f32 %v1229, %v1303
        %v1305 = vxor.u32 %v1304, 2147483648
        %v1306 = vmul.f32 %v1305, 1.442695
        %v1307 = vpow.pop %v1306
        %v1308 = vadd.f32 %v1307, 1.0
        %v1309 = vrcp.pop %v1308
        %v1310 = vmul.f32 1.0, %v1309
        %v1311 = vmul.f32 %v1304, %v1310
        %v1312 = vcombine.high %v1278, %v1278
        %1313 = vrot.lane.b32.xlu0 %v1312, 111
        %v1314 = vpop.permute.xlu0 %1313
        %v1315 = vrot.slane %v1314, 7
        %v1316 = vsel %vm472, %v1315, %v1314
        %v1318 = vadd.f32 %v1311, %v1316
        %v1320 = vlaneseq
        %v1321 = vshrl.u32 %v1320, 7
        %v1322 = vsub.s32 0, %v1321
        %v1323 = vrot.slane %v1260, %v1322
        %v1324 = vlaneseq
        %v1325 = vshrl.u32 %v1324, 7
        %v1326 = vsub.s32 1, %v1325
        %v1327 = vrot.slane %v1260, %v1326
        %v1328 = vlaneseq
        %v1329 = vshrl.u32 %v1328, 7
        %v1330 = vsub.s32 2, %v1329
        %v1331 = vrot.slane %v1260, %v1330
        %v1336 = vlaneseq
        %v1337 = vshrl.u32 %v1336, 7
        %v1338 = vsub.s32 0, %v1337
        %v1339 = vrot.slane %v1284, %v1338
        %v1340 = vlaneseq
        %v1341 = vshrl.u32 %v1340, 7
        %v1342 = vsub.s32 1, %v1341
        %v1343 = vrot.slane %v1284, %v1342
        %v1344 = vlaneseq
        %v1345 = vshrl.u32 %v1344, 7
        %v1346 = vsub.s32 2, %v1345
        %v1347 = vrot.slane %v1284, %v1346
        %v1352 = vlaneseq
        %v1353 = vshrl.u32 %v1352, 7
        %v1354 = vsub.s32 0, %v1353
        %v1355 = vrot.slane %v1301, %v1354
        %v1356 = vlaneseq
        %v1357 = vshrl.u32 %v1356, 7
        %v1358 = vsub.s32 1, %v1357
        %v1359 = vrot.slane %v1301, %v1358
        %v1360 = vlaneseq
        %v1361 = vshrl.u32 %v1360, 7
        %v1362 = vsub.s32 2, %v1361
        %v1363 = vrot.slane %v1301, %v1362
        %v1368 = vlaneseq
        %v1369 = vshrl.u32 %v1368, 7
        %v1370 = vsub.s32 0, %v1369
        %v1371 = vrot.slane %v1318, %v1370
        %v1372 = vlaneseq
        %v1373 = vshrl.u32 %v1372, 7
        %v1374 = vsub.s32 1, %v1373
        %v1375 = vrot.slane %v1318, %v1374
        %v1376 = vlaneseq
        %v1377 = vshrl.u32 %v1376, 7
        %v1378 = vsub.s32 2, %v1377
        %v1379 = vrot.slane %v1318, %v1378
        %vm1383 = vcmask 1040384
        %v1384 = vsel %vm1383, %v1323, %v1339
        %v1385 = vsel %vm1383, %v1327, %v1343
        %v1386 = vsel %vm1383, %v1331, %v1347
        %vm1387 = vcmask 1041408
        %v1388 = vsel %vm1387, %v1384, %v1355
        %v1389 = vsel %vm1387, %v1385, %v1359
        %v1390 = vsel %vm1387, %v1386, %v1363
        %vm1391 = vcmask 1042432
        %v1392 = vsel %vm1391, %v1388, %v1371
        %v1393 = vsel %vm1391, %v1389, %v1375
        %v1394 = vsel %vm1391, %v1390, %v1379
        %v1398 = vcombine.low %v1392, %v1393
        %1399 = vrot.lane.b32.xlu0 %v1398, 17
        %v1400 = vpop.permute.xlu0 %1399
        %1401 = vrot.lane.b32.xlu0 %v1394, 17
        %v1402 = vpop.permute.xlu0 %1401
        %v1403 = vrot.slane %v1400, 4
        %v1404 = vrot.slane %v1402, 4
        %vm1405 = vcmask 1043456
        %v1406 = vsel %vm1405, %v1403, %v1404
        %v1407 = vsel %vm1143, %v1400, %v1406
        %1409 = vst [vmem:[%s292] sm:$0xff] %v1407
        %s1410 = sand.u32 %s143, 1
        %s1411 = scalar_lea.sflag [#allocation5], %s1410
        %s1412 = sand.u32 %s143, 1
        %s1413 = smul.addr %s1412, 8
        %s1414 = scalar_lea.vmem [#allocation13], %s1413
        // Predicated region
        $region61: #{tpu_custom_call.1} parent=39 // pred_check
          %p1415 = pneg %p153
        $region62: #{tpu_custom_call.1} parent=39 // pred_check_branch
          %1417 = sbr.rel (%p1415) target = $region64
        $region63: #{tpu_custom_call.1} parent=39 // pred_region
          %s1419 = ssub.s32 128, 128
          %1420 = vsyncadd %s1411, %s1419
          %s1421 = smul.addr %s25, 2
          %s1422 = smul.addr %s1421, 64
          %s1423 = scalar_lea.hbm %s5, %s1422
          %s1425 = sshll.u32 %s1414, 4
          %s1426 = int_to_ptr.vmem [resolvable:$true] %s1425
          %1428 = dma.vmem_to_hbm [thread:$0]  %s1426, 128, %s1423, %s1411
        $region64: #{tpu_custom_call.1} parent=39 // pred_fallthru
          _
      $region40: #{tpu_custom_call.1} parent=5 // pred_fallthru
        _
      %p1429 = scmp.le.s32.totalorder 2, %s20
      // Predicated region
      $region65: #{tpu_custom_call.1} parent=5 // pred_check
        %p1430 = pneg %p1429
      $region66: #{tpu_custom_call.1} parent=5 // pred_check_branch
        %1432 = sbr.rel (%p1430) target = $region68
      $region67: #{tpu_custom_call.1} parent=5 // pred_region
        %s1433 = ssub.s32 %s20, 2
        // Predicated region
        $region69: #{tpu_custom_call.1} parent=67 // pred_check
          %p1434 = pneg %p159
        $region70: #{tpu_custom_call.1} parent=67 // pred_check_branch
          %1436 = sbr.rel (%p1434) target = $region72
        $region71: #{tpu_custom_call.1} parent=67 // pred_region
          %s1437 = sand.u32 %s144, 1
          %s1438 = scalar_lea.sflag [#allocation5], %s1437
          %s1439 = sand.u32 %s144, 1
          %s1440 = smul.addr %s1439, 8
          %s1441 = scalar_lea.vmem [#allocation13], %s1440
          %1442 = dma.done %s1438, 128
        $region72: #{tpu_custom_call.1} parent=67 // pred_fallthru
          _
      $region68: #{tpu_custom_call.1} parent=5 // pred_fallthru
        _
    $region6: #{tpu_custom_call.1} parent=1 // loop_footer
      %s24 = sadd.s32 1, %s20
    $region7: #{tpu_custom_call.1} parent=1 // loop_footer_branch
      %19 = sbr.rel target = $region3
    $region8: #{tpu_custom_call.1} parent=1 // loop_exit
      _
    %1443 = vsyncpa [#allocation4], 1
    %s1444 = scalar_lea.sflag [#allocation4], 1
    %1445 = vsyncpa %s1444, 1
    %1446 = vsyncpa [#allocation5], 1
    %s1447 = scalar_lea.sflag [#allocation5], 1
    %1448 = vsyncpa %s1447, 1
    %1449 = vsyncpa [#allocation6], 1
    %s1450 = scalar_lea.sflag [#allocation6], 1
    %1451 = vsyncpa %s1450, 1
    %1452 = vsyncpa [#allocation9], 1
    %1453 = vsyncpa [#allocation12], 1

</llo_original>
